<compile_context>
chip_gen: v6e
topology: v6e:2x2x1
jax: 0.10.0
libtpu: 0.0.40
codegen_flags: <defaults>
</compile_context>

<pallas_src>
import functools
import math

import jax
import jax.numpy as jnp
from jax.experimental import pallas as pl
from jax.experimental.pallas import tpu as pltpu


def _fff_loss_kernel(xt_ref, v0t_ref, zpt_ref,
                     w1f_ref, w2f_ref, w1ft_ref, w2ft_ref, b1f_ref, b2f_ref,
                     w1g_ref, w2g_ref, w1gt_ref, w2gt_ref, b1g_ref, b2g_ref,
                     out_ref,
                     acc_pos_ref, acc_tr_ref, cat_ref,
                     *, beta):
    i = pl.program_id(1)          # reduction ("arbitrary") axis within a split

    @pl.when(i == 0)
    def _init():
        acc_pos_ref[...] = jnp.zeros_like(acc_pos_ref)
        acc_tr_ref[...] = jnp.zeros_like(acc_tr_ref)

    # Batch-in-lanes: every activation is (features, batch_tile) -> lane-dense.
    x = xt_ref[...]               # (D, TB) f32
    v0 = v0t_ref[...]             # (D, TB) f32  Hutchinson probe
    zp = zpt_ref[...]             # (D, TB) f32  latent prior sample z_
    d, tb = x.shape
    bf16 = jnp.bfloat16

    # forward orientation (original): W1 (H, D), W2 (D, H)
    w1f = w1f_ref[...]; w2f = w2f_ref[...]
    w1g = w1g_ref[...]; w2g = w2g_ref[...]
    # VJP orientation (pre-transposed in the wrapper): W1^T (D, H), W2^T (H, D)
    w1ft = w1ft_ref[...]; w2ft = w2ft_ref[...]
    w1gt = w1gt_ref[...]; w2gt = w2gt_ref[...]
    b1f = b1f_ref[...]; b2f = b2f_ref[...]        # (H, 1), (D, 1) f32
    b1g = b1g_ref[...]; b2g = b2g_ref[...]

    def fwd(inp_bf, w1, b1, w2, b2):
        # inp (D, N) bf16 -> tanh hidden (H, N) f32 -> out (D, N) f32.
        a = jnp.tanh(jnp.dot(w1, inp_bf, preferred_element_type=jnp.float32) + b1)
        out = jnp.dot(w2, a.astype(bf16), preferred_element_type=jnp.float32) + b2
        return out, a

    def vjp_in(cot, a, w1t, w2t):
        # VJP of the MLP w.r.t. its input applied to cotangent cot (D, N):
        #   v = W1^T diag(1 - a^2) W2^T cot
        u = jnp.dot(w2t, cot.astype(bf16), preferred_element_type=jnp.float32)  # (H, N)
        u = u * (1.0 - a * a)                                                   # tanh'
        return jnp.dot(w1t, u.astype(bf16), preferred_element_type=jnp.float32)  # (D, N)

    # g(z_) first; then one merged f sweep over [x | g(z_)] -> [z | f(g(z_))].
    gz, _ = fwd(zp.astype(bf16), w1g, b1g, w2g, b2g)          # (D, TB)
    cat_ref[:, :tb] = x.astype(bf16)                          # no jnp.concatenate
    cat_ref[:, tb:] = gz.astype(bf16)
    fcat, acat = fwd(cat_ref[...], w1f, b1f, w2f, b2f)        # (D, 2TB), (H, 2TB)
    z = fcat[:, :tb]
    fgz = fcat[:, tb:]
    af = acat[:, :tb]
    y, ag = fwd(z.astype(bf16), w1g, b1g, w2g, b2g)           # (D, TB)

    # Hutchinson estimator (hutchinson == 1): v1 = (dg/dz)^T v0, v2 = (df/dx)^T v1
    v1 = vjp_in(v0, ag, w1gt, w2gt)
    v2 = vjp_in(v1, af, w1ft, w2ft)

    diff = y - x           # l_re term
    diff2 = zp - fgz       # l_re_ term

    # Elementwise accumulation only (VPU); reductions deferred to the last step.
    acc_pos_ref[...] += beta * (diff * diff + diff2 * diff2) + 0.5 * (z * z)
    acc_tr_ref[...] += v0 * v2

    @pl.when(i == pl.num_programs(1) - 1)
    def _finalize():
        s = acc_pos_ref[...] - acc_tr_ref[...]
        s = jnp.sum(s, axis=1, keepdims=True)    # lane reduce    -> (D, 1)
        s = jnp.sum(s, axis=0, keepdims=True)    # sublane reduce -> (1, 1)
        # Lane-dense, unmasked (8, 128) store of this split's partial sum;
        # the /B and +0.5*D*log(2*pi) finish happens in the wrapper.
        out_ref[...] = jnp.broadcast_to(s, out_ref.shape)


def _pick_block_b(batch, cap=4096):
    # Biggest multiple-of-128 tile that divides the batch (lane-dense layout
    # keeps VMEM ~ 4*D*TB bytes per streamed buffer, so large tiles are cheap).
    cap = min(batch, cap)
    b = (cap // 128) * 128
    while b >= 128:
        if batch % b == 0:
            return b
        b -= 128
    return batch   # fall back: single full-batch tile (block == full array)


def fff_loss(x, v0, z_prior, params, beta=10.0, block_b=None, nsplit=None):
    B, D = x.shape
    H = params["w1f"].shape[0]

    if block_b is None:
        block_b = _pick_block_b(B)
    assert B % block_b == 0, (B, block_b)
    assert block_b % 128 == 0 or block_b == B, (B, block_b)
    n_tiles = B // block_b

    # Leading "parallel" grid axis -> independent partial sums (2 TCs on v7x;
    # plain sequential outer loop on single-TC chips, still correct).
    if nsplit is None:
        nsplit = 2 if (n_tiles % 2 == 0 and n_tiles >= 2) else 1
    assert n_tiles % nsplit == 0, (n_tiles, nsplit)
    steps = n_tiles // nsplit

    bf16 = jnp.bfloat16
    f32 = jnp.float32

    w1f, w2f = params["w1f"], params["w2f"]
    w1g, w2g = params["w1g"], params["w2g"]

    inputs = (
        # batch-in-lanes activation streams
        x.T.astype(f32), v0.T.astype(f32), z_prior.T.astype(f32),
        # f net: forward orientation, VJP orientation, biases as columns
        w1f.astype(bf16), w2f.astype(bf16), w1f.T.astype(bf16), w2f.T.astype(bf16),
        params["b1f"].T.astype(f32), params["b2f"].T.astype(f32),
        # g net
        w1g.astype(bf16), w2g.astype(bf16), w1g.T.astype(bf16), w2g.T.astype(bf16),
        params["b1g"].T.astype(f32), params["b2g"].T.astype(f32),
    )

    data_spec = pl.BlockSpec((D, block_b), lambda c, i: (0, c * steps + i))

    def _full(shape):
        # resident across grid iterations (constant block index -> single DMA)
        return pl.BlockSpec(shape, lambda c, i: (0, 0))

    in_specs = [
        data_spec, data_spec, data_spec,
        _full((H, D)), _full((D, H)), _full((D, H)), _full((H, D)),
        _full((H, 1)), _full((D, 1)),
        _full((H, D)), _full((D, H)), _full((D, H)), _full((H, D)),
        _full((H, 1)), _full((D, 1)),
    ]

    out = pl.pallas_call(
        functools.partial(_fff_loss_kernel, beta=float(beta)),
        out_shape=jax.ShapeDtypeStruct((nsplit * 8, 128), jnp.float32),
        grid_spec=pltpu.PrefetchScalarGridSpec(
            num_scalar_prefetch=0,
            grid=(nsplit, steps),
            in_specs=in_specs,
            out_specs=pl.BlockSpec((8, 128), lambda c, i: (c, 0)),
            scratch_shapes=[
                pltpu.VMEM((D, block_b), jnp.float32),       # acc_pos (elementwise)
                pltpu.VMEM((D, block_b), jnp.float32),       # acc_tr  (elementwise)
                pltpu.VMEM((D, 2 * block_b), jnp.bfloat16),  # [x | g(z_)] for merged f sweep
            ],
        ),
        compiler_params=pltpu.CompilerParams(
            dimension_semantics=("parallel", "arbitrary")),
    )(*inputs)

    partials = out[::8, 0]                              # one partial per split
    const = 0.5 * D * math.log(2.0 * math.pi)
    return jnp.sum(partials) * (1.0 / B) + const


# ---------------- pure-JAX reference (for verification only) ----------------
def _ref_loss(x, v0, z_prior, p, beta=10.0):
    def f(inp):
        a = jnp.tanh(inp @ p["w1f"].T + p["b1f"])
        return a @ p["w2f"].T + p["b2f"]

    def g(inp):
        a = jnp.tanh(inp @ p["w1g"].T + p["b1g"])
        return a @ p["w2g"].T + p["b2g"]

    z, f_vjp = jax.vjp(f, x)
    y, g_vjp = jax.vjp(g, z)
    l_re = jnp.mean(jnp.sum((y - x) ** 2, axis=-1))
    v1 = g_vjp(v0)[0]
    v2 = f_vjp(v1)[0]
    log_normal = -(jnp.sum(z ** 2 + math.log(2 * math.pi), axis=-1)) / 2
    l_ml = -jnp.mean(jnp.sum(v0 * v2, axis=-1)) - jnp.mean(log_normal)
    l_re_ = jnp.mean(jnp.sum((z_prior - f(g(z_prior))) ** 2, axis=-1))
    return l_ml + beta * (l_re + l_re_)


def _init_linear(key, out_dim, in_dim):
    kw, kb = jax.random.split(key)
    bound = 1.0 / math.sqrt(in_dim)
    w = jax.random.uniform(kw, (out_dim, in_dim), jnp.float32, -bound, bound)
    b = jax.random.uniform(kb, (1, out_dim), jnp.float32, -bound, bound)
    return w, b


if __name__ == "__main__":
    # Small shapes, but B/TB = 4 tiles x 2 splits exercises the pipeline and
    # the parallel/arbitrary grid + per-split partial-sum path.
    B, D, H = 512, 16, 32
    TB = 128
    key = jax.random.PRNGKey(0)
    kx, kv0, kzp, k1, k2, k3, k4 = jax.random.split(key, 7)

    x = jax.random.normal(kx, (B, D), jnp.float32)
    v0 = jax.random.normal(kv0, (B, D), jnp.float32)        # Hutchinson probe
    z_prior = jax.random.normal(kzp, (B, D), jnp.float32)   # z_ ~ N(0, I)

    w1f, b1f = _init_linear(k1, H, D)
    w2f, b2f = _init_linear(k2, D, H)
    w1g, b1g = _init_linear(k3, H, D)
    w2g, b2g = _init_linear(k4, D, H)
    params = dict(w1f=w1f, b1f=b1f, w2f=w2f, b2f=b2f,
                  w1g=w1g, b1g=b1g, w2g=w2g, b2g=b2g)

    loss = fff_loss(x, v0, z_prior, params, beta=10.0, block_b=TB)
    loss = jax.block_until_ready(loss)

    ref = _ref_loss(x, v0, z_prior, params, beta=10.0)
    # bf16 MXU operands -> looser tolerance than the previous all-f32 kernel.
    assert jnp.allclose(loss, ref, rtol=1e-2, atol=5e-2), (loss, ref)

    print("KERNEL_OK")
</pallas_src>

<mosaic_0001>
module attributes {stable_mosaic.version = 11 : i64} {
  func.func @_fff_loss_kernel(%arg0: i32, %arg1: i32, %arg2: memref<16x128xf32, #tpu.memory_space<vmem>>, %arg3: memref<16x128xf32, #tpu.memory_space<vmem>>, %arg4: memref<16x128xf32, #tpu.memory_space<vmem>>, %arg5: memref<32x16xbf16, #tpu.memory_space<vmem>>, %arg6: memref<16x32xbf16, #tpu.memory_space<vmem>>, %arg7: memref<16x32xbf16, #tpu.memory_space<vmem>>, %arg8: memref<32x16xbf16, #tpu.memory_space<vmem>>, %arg9: memref<32x1xf32, #tpu.memory_space<vmem>>, %arg10: memref<16x1xf32, #tpu.memory_space<vmem>>, %arg11: memref<32x16xbf16, #tpu.memory_space<vmem>>, %arg12: memref<16x32xbf16, #tpu.memory_space<vmem>>, %arg13: memref<16x32xbf16, #tpu.memory_space<vmem>>, %arg14: memref<32x16xbf16, #tpu.memory_space<vmem>>, %arg15: memref<32x1xf32, #tpu.memory_space<vmem>>, %arg16: memref<16x1xf32, #tpu.memory_space<vmem>>, %arg17: memref<8x128xf32, #tpu.memory_space<vmem>>, %arg18: memref<16x128xf32, #tpu.memory_space<vmem>>, %arg19: memref<16x128xf32, #tpu.memory_space<vmem>>, %arg20: memref<16x256xbf16, #tpu.memory_space<vmem>>) attributes {dimension_semantics = [#tpu.dimension_semantics<parallel>, #tpu.dimension_semantics<arbitrary>], iteration_bounds = array<i64: 2, 2>, scalar_prefetch = 0 : i64, scratch_operands = 3 : i64, tpu.core_type = #tpu.core_type<tc>, window_params = [{transform_indices = @transform_0, window_bounds = array<i64: 16, 128>}, {transform_indices = @transform_1, window_bounds = array<i64: 16, 128>}, {transform_indices = @transform_2, window_bounds = array<i64: 16, 128>}, {pipeline_mode = #tpu.pipeline_mode<synchronous>, transform_indices = @transform_3, window_bounds = array<i64: 32, 16>}, {pipeline_mode = #tpu.pipeline_mode<synchronous>, transform_indices = @transform_4, window_bounds = array<i64: 16, 32>}, {pipeline_mode = #tpu.pipeline_mode<synchronous>, transform_indices = @transform_5, window_bounds = array<i64: 16, 32>}, {pipeline_mode = #tpu.pipeline_mode<synchronous>, transform_indices = @transform_6, window_bounds = array<i64: 32, 16>}, {pipeline_mode = #tpu.pipeline_mode<synchronous>, transform_indices = @transform_7, window_bounds = array<i64: 32, 1>}, {pipeline_mode = #tpu.pipeline_mode<synchronous>, transform_indices = @transform_8, window_bounds = array<i64: 16, 1>}, {pipeline_mode = #tpu.pipeline_mode<synchronous>, transform_indices = @transform_9, window_bounds = array<i64: 32, 16>}, {pipeline_mode = #tpu.pipeline_mode<synchronous>, transform_indices = @transform_10, window_bounds = array<i64: 16, 32>}, {pipeline_mode = #tpu.pipeline_mode<synchronous>, transform_indices = @transform_11, window_bounds = array<i64: 16, 32>}, {pipeline_mode = #tpu.pipeline_mode<synchronous>, transform_indices = @transform_12, window_bounds = array<i64: 32, 16>}, {pipeline_mode = #tpu.pipeline_mode<synchronous>, transform_indices = @transform_13, window_bounds = array<i64: 32, 1>}, {pipeline_mode = #tpu.pipeline_mode<synchronous>, transform_indices = @transform_14, window_bounds = array<i64: 16, 1>}, {transform_indices = @transform_15, window_bounds = array<i64: 8, 128>}]} {
    %c0_i32 = arith.constant 0 : i32
    %0 = arith.cmpi eq, %arg1, %c0_i32 : i32
    %1 = arith.extui %0 : i1 to i32
    %c0_i32_0 = arith.constant 0 : i32
    %2 = arith.cmpi ne, %1, %c0_i32_0 : i32
    scf.if %2 {
      %cst_57 = arith.constant 0.000000e+00 : f32
      %89 = vector.broadcast %cst_57 : f32 to vector<16x128xf32>
      %c0_58 = arith.constant 0 : index
      %c0_59 = arith.constant 0 : index
      %90 = vector.load %arg18[%c0_58, %c0_59] : memref<16x128xf32, #tpu.memory_space<vmem>>, vector<16x128xf32>
      tpu.vector_store %arg18[%c0_58, %c0_59], %89 {strides = array<i32>} : memref<16x128xf32, #tpu.memory_space<vmem>>, vector<16x128xf32>,
      %cst_60 = arith.constant 0.000000e+00 : f32
      %91 = vector.broadcast %cst_60 : f32 to vector<16x128xf32>
      %c0_61 = arith.constant 0 : index
      %c0_62 = arith.constant 0 : index
      %92 = vector.load %arg19[%c0_61, %c0_62] : memref<16x128xf32, #tpu.memory_space<vmem>>, vector<16x128xf32>
      tpu.vector_store %arg19[%c0_61, %c0_62], %91 {strides = array<i32>} : memref<16x128xf32, #tpu.memory_space<vmem>>, vector<16x128xf32>,
    } else {
    }
    %c0 = arith.constant 0 : index
    %c0_1 = arith.constant 0 : index
    %3 = vector.load %arg2[%c0, %c0_1] : memref<16x128xf32, #tpu.memory_space<vmem>>, vector<16x128xf32>
    %c0_2 = arith.constant 0 : index
    %c0_3 = arith.constant 0 : index
    %4 = vector.load %arg3[%c0_2, %c0_3] : memref<16x128xf32, #tpu.memory_space<vmem>>, vector<16x128xf32>
    %c0_4 = arith.constant 0 : index
    %c0_5 = arith.constant 0 : index
    %5 = vector.load %arg4[%c0_4, %c0_5] : memref<16x128xf32, #tpu.memory_space<vmem>>, vector<16x128xf32>
    %c0_6 = arith.constant 0 : index
    %c0_7 = arith.constant 0 : index
    %6 = vector.load %arg5[%c0_6, %c0_7] : memref<32x16xbf16, #tpu.memory_space<vmem>>, vector<32x16xbf16>
    %c0_8 = arith.constant 0 : index
    %c0_9 = arith.constant 0 : index
    %7 = vector.load %arg6[%c0_8, %c0_9] : memref<16x32xbf16, #tpu.memory_space<vmem>>, vector<16x32xbf16>
    %c0_10 = arith.constant 0 : index
    %c0_11 = arith.constant 0 : index
    %8 = vector.load %arg11[%c0_10, %c0_11] : memref<32x16xbf16, #tpu.memory_space<vmem>>, vector<32x16xbf16>
    %c0_12 = arith.constant 0 : index
    %c0_13 = arith.constant 0 : index
    %9 = vector.load %arg12[%c0_12, %c0_13] : memref<16x32xbf16, #tpu.memory_space<vmem>>, vector<16x32xbf16>
    %c0_14 = arith.constant 0 : index
    %c0_15 = arith.constant 0 : index
    %10 = vector.load %arg7[%c0_14, %c0_15] : memref<16x32xbf16, #tpu.memory_space<vmem>>, vector<16x32xbf16>
    %c0_16 = arith.constant 0 : index
    %c0_17 = arith.constant 0 : index
    %11 = vector.load %arg8[%c0_16, %c0_17] : memref<32x16xbf16, #tpu.memory_space<vmem>>, vector<32x16xbf16>
    %c0_18 = arith.constant 0 : index
    %c0_19 = arith.constant 0 : index
    %12 = vector.load %arg13[%c0_18, %c0_19] : memref<16x32xbf16, #tpu.memory_space<vmem>>, vector<16x32xbf16>
    %c0_20 = arith.constant 0 : index
    %c0_21 = arith.constant 0 : index
    %13 = vector.load %arg14[%c0_20, %c0_21] : memref<32x16xbf16, #tpu.memory_space<vmem>>, vector<32x16xbf16>
    %c0_22 = arith.constant 0 : index
    %c0_23 = arith.constant 0 : index
    %14 = vector.load %arg9[%c0_22, %c0_23] : memref<32x1xf32, #tpu.memory_space<vmem>>, vector<32x1xf32>
    %c0_24 = arith.constant 0 : index
    %c0_25 = arith.constant 0 : index
    %15 = vector.load %arg10[%c0_24, %c0_25] : memref<16x1xf32, #tpu.memory_space<vmem>>, vector<16x1xf32>
    %c0_26 = arith.constant 0 : index
    %c0_27 = arith.constant 0 : index
    %16 = vector.load %arg15[%c0_26, %c0_27] : memref<32x1xf32, #tpu.memory_space<vmem>>, vector<32x1xf32>
    %c0_28 = arith.constant 0 : index
    %c0_29 = arith.constant 0 : index
    %17 = vector.load %arg16[%c0_28, %c0_29] : memref<16x1xf32, #tpu.memory_space<vmem>>, vector<16x1xf32>
    %18 = arith.truncf %5 : vector<16x128xf32> to vector<16x128xbf16>
    %cst = arith.constant dense<0.000000e+00> : vector<32x128xf32>
    %19 = tpu.matmul %8, %18, %cst {dimension_numbers = #tpu.dot_dimension_numbers<[1], [0], [0], [1], [0, 0, 1, 1], [], []>} : vector<32x16xbf16>, vector<16x128xbf16>, vector<32x128xf32> -> vector<32x128xf32>
    %20 = vector.broadcast %16 : vector<32x1xf32> to vector<32x128xf32>
    %21 = arith.addf %19, %20 : vector<32x128xf32>
    %22 = math.tanh %21 : vector<32x128xf32>
    %23 = arith.truncf %22 : vector<32x128xf32> to vector<32x128xbf16>
    %cst_30 = arith.constant dense<0.000000e+00> : vector<16x128xf32>
    %24 = tpu.matmul %9, %23, %cst_30 {dimension_numbers = #tpu.dot_dimension_numbers<[1], [0], [0], [1], [0, 0, 1, 1], [], []>} : vector<16x32xbf16>, vector<32x128xbf16>, vector<16x128xf32> -> vector<16x128xf32>
    %25 = vector.broadcast %17 : vector<16x1xf32> to vector<16x128xf32>
    %26 = arith.addf %24, %25 : vector<16x128xf32>
    %27 = arith.truncf %3 : vector<16x128xf32> to vector<16x128xbf16>
    %c0_31 = arith.constant 0 : index
    %c0_32 = arith.constant 0 : index
    %28 = vector.load %arg20[%c0_31, %c0_32] : memref<16x256xbf16, #tpu.memory_space<vmem>>, vector<16x128xbf16>
    tpu.vector_store %arg20[%c0_31, %c0_32], %27 {strides = array<i32>} : memref<16x256xbf16, #tpu.memory_space<vmem>>, vector<16x128xbf16>,
    %29 = arith.truncf %26 : vector<16x128xf32> to vector<16x128xbf16>
    %c0_33 = arith.constant 0 : index
    %c128 = arith.constant 128 : index
    %30 = vector.load %arg20[%c0_33, %c128] : memref<16x256xbf16, #tpu.memory_space<vmem>>, vector<16x128xbf16>
    tpu.vector_store %arg20[%c0_33, %c128], %29 {strides = array<i32>} : memref<16x256xbf16, #tpu.memory_space<vmem>>, vector<16x128xbf16>,
    %c0_34 = arith.constant 0 : index
    %c0_35 = arith.constant 0 : index
    %31 = vector.load %arg20[%c0_34, %c0_35] : memref<16x256xbf16, #tpu.memory_space<vmem>>, vector<16x256xbf16>
    %cst_36 = arith.constant dense<0.000000e+00> : vector<32x256xf32>
    %32 = tpu.matmul %6, %31, %cst_36 {dimension_numbers = #tpu.dot_dimension_numbers<[1], [0], [0], [1], [0, 0, 1, 1], [], []>} : vector<32x16xbf16>, vector<16x256xbf16>, vector<32x256xf32> -> vector<32x256xf32>
    %33 = vector.broadcast %14 : vector<32x1xf32> to vector<32x256xf32>
    %34 = arith.addf %32, %33 : vector<32x256xf32>
    %35 = math.tanh %34 : vector<32x256xf32>
    %36 = arith.truncf %35 : vector<32x256xf32> to vector<32x256xbf16>
    %cst_37 = arith.constant dense<0.000000e+00> : vector<16x256xf32>
    %37 = tpu.matmul %7, %36, %cst_37 {dimension_numbers = #tpu.dot_dimension_numbers<[1], [0], [0], [1], [0, 0, 1, 1], [], []>} : vector<16x32xbf16>, vector<32x256xbf16>, vector<16x256xf32> -> vector<16x256xf32>
    %38 = vector.broadcast %15 : vector<16x1xf32> to vector<16x256xf32>
    %39 = arith.addf %37, %38 : vector<16x256xf32>
    %40 = vector.extract_strided_slice %39 {offsets = [0, 0], sizes = [16, 128], strides = [1, 1]} : vector<16x256xf32> to vector<16x128xf32>
    %41 = vector.extract_strided_slice %39 {offsets = [0, 128], sizes = [16, 128], strides = [1, 1]} : vector<16x256xf32> to vector<16x128xf32>
    %42 = vector.extract_strided_slice %35 {offsets = [0, 0], sizes = [32, 128], strides = [1, 1]} : vector<32x256xf32> to vector<32x128xf32>
    %43 = arith.truncf %40 : vector<16x128xf32> to vector<16x128xbf16>
    %cst_38 = arith.constant dense<0.000000e+00> : vector<32x128xf32>
    %44 = tpu.matmul %8, %43, %cst_38 {dimension_numbers = #tpu.dot_dimension_numbers<[1], [0], [0], [1], [0, 0, 1, 1], [], []>} : vector<32x16xbf16>, vector<16x128xbf16>, vector<32x128xf32> -> vector<32x128xf32>
    %45 = vector.broadcast %16 : vector<32x1xf32> to vector<32x128xf32>
    %46 = arith.addf %44, %45 : vector<32x128xf32>
    %47 = math.tanh %46 : vector<32x128xf32>
    %48 = arith.truncf %47 : vector<32x128xf32> to vector<32x128xbf16>
    %cst_39 = arith.constant dense<0.000000e+00> : vector<16x128xf32>
    %49 = tpu.matmul %9, %48, %cst_39 {dimension_numbers = #tpu.dot_dimension_numbers<[1], [0], [0], [1], [0, 0, 1, 1], [], []>} : vector<16x32xbf16>, vector<32x128xbf16>, vector<16x128xf32> -> vector<16x128xf32>
    %50 = vector.broadcast %17 : vector<16x1xf32> to vector<16x128xf32>
    %51 = arith.addf %49, %50 : vector<16x128xf32>
    %52 = arith.truncf %4 : vector<16x128xf32> to vector<16x128xbf16>
    %cst_40 = arith.constant dense<0.000000e+00> : vector<32x128xf32>
    %53 = tpu.matmul %13, %52, %cst_40 {dimension_numbers = #tpu.dot_dimension_numbers<[1], [0], [0], [1], [0, 0, 1, 1], [], []>} : vector<32x16xbf16>, vector<16x128xbf16>, vector<32x128xf32> -> vector<32x128xf32>
    %54 = arith.mulf %47, %47 : vector<32x128xf32>
    %cst_41 = arith.constant 1.000000e+00 : f32
    %55 = vector.broadcast %cst_41 : f32 to vector<32x128xf32>
    %56 = arith.subf %55, %54 : vector<32x128xf32>
    %57 = arith.mulf %53, %56 : vector<32x128xf32>
    %58 = arith.truncf %57 : vector<32x128xf32> to vector<32x128xbf16>
    %cst_42 = arith.constant dense<0.000000e+00> : vector<16x128xf32>
    %59 = tpu.matmul %12, %58, %cst_42 {dimension_numbers = #tpu.dot_dimension_numbers<[1], [0], [0], [1], [0, 0, 1, 1], [], []>} : vector<16x32xbf16>, vector<32x128xbf16>, vector<16x128xf32> -> vector<16x128xf32>
    %60 = arith.truncf %59 : vector<16x128xf32> to vector<16x128xbf16>
    %cst_43 = arith.constant dense<0.000000e+00> : vector<32x128xf32>
    %61 = tpu.matmul %11, %60, %cst_43 {dimension_numbers = #tpu.dot_dimension_numbers<[1], [0], [0], [1], [0, 0, 1, 1], [], []>} : vector<32x16xbf16>, vector<16x128xbf16>, vector<32x128xf32> -> vector<32x128xf32>
    %62 = arith.mulf %42, %42 : vector<32x128xf32>
    %cst_44 = arith.constant 1.000000e+00 : f32
    %63 = vector.broadcast %cst_44 : f32 to vector<32x128xf32>
    %64 = arith.subf %63, %62 : vector<32x128xf32>
    %65 = arith.mulf %61, %64 : vector<32x128xf32>
    %66 = arith.truncf %65 : vector<32x128xf32> to vector<32x128xbf16>
    %cst_45 = arith.constant dense<0.000000e+00> : vector<16x128xf32>
    %67 = tpu.matmul %10, %66, %cst_45 {dimension_numbers = #tpu.dot_dimension_numbers<[1], [0], [0], [1], [0, 0, 1, 1], [], []>} : vector<16x32xbf16>, vector<32x128xbf16>, vector<16x128xf32> -> vector<16x128xf32>
    %68 = arith.subf %51, %3 : vector<16x128xf32>
    %69 = arith.subf %5, %41 : vector<16x128xf32>
    %c0_46 = arith.constant 0 : index
    %c0_47 = arith.constant 0 : index
    %70 = vector.load %arg18[%c0_46, %c0_47] : memref<16x128xf32, #tpu.memory_space<vmem>>, vector<16x128xf32>
    %71 = arith.mulf %68, %68 : vector<16x128xf32>
    %72 = arith.mulf %69, %69 : vector<16x128xf32>
    %73 = arith.addf %71, %72 : vector<16x128xf32>
    %cst_48 = arith.constant 1.000000e+01 : f32
    %74 = vector.broadcast %cst_48 : f32 to vector<16x128xf32>
    %75 = arith.mulf %74, %73 : vector<16x128xf32>
    %76 = arith.mulf %40, %40 : vector<16x128xf32>
    %cst_49 = arith.constant 5.000000e-01 : f32
    %77 = vector.broadcast %cst_49 : f32 to vector<16x128xf32>
    %78 = arith.mulf %77, %76 : vector<16x128xf32>
    %79 = arith.addf %75, %78 : vector<16x128xf32>
    %80 = arith.addf %70, %79 : vector<16x128xf32>
    %c0_50 = arith.constant 0 : index
    %c0_51 = arith.constant 0 : index
    %81 = vector.load %arg18[%c0_50, %c0_51] : memref<16x128xf32, #tpu.memory_space<vmem>>, vector<16x128xf32>
    tpu.vector_store %arg18[%c0_50, %c0_51], %80 {strides = array<i32>} : memref<16x128xf32, #tpu.memory_space<vmem>>, vector<16x128xf32>,
    %c0_52 = arith.constant 0 : index
    %c0_53 = arith.constant 0 : index
    %82 = vector.load %arg19[%c0_52, %c0_53] : memref<16x128xf32, #tpu.memory_space<vmem>>, vector<16x128xf32>
    %83 = arith.mulf %4, %67 : vector<16x128xf32>
    %84 = arith.addf %82, %83 : vector<16x128xf32>
    %c0_54 = arith.constant 0 : index
    %c0_55 = arith.constant 0 : index
    %85 = vector.load %arg19[%c0_54, %c0_55] : memref<16x128xf32, #tpu.memory_space<vmem>>, vector<16x128xf32>
    tpu.vector_store %arg19[%c0_54, %c0_55], %84 {strides = array<i32>} : memref<16x128xf32, #tpu.memory_space<vmem>>, vector<16x128xf32>,
    %c1_i32 = arith.constant 1 : i32
    %86 = arith.cmpi eq, %arg1, %c1_i32 : i32
    %87 = arith.extui %86 : i1 to i32
    %c0_i32_56 = arith.constant 0 : i32
    %88 = arith.cmpi ne, %87, %c0_i32_56 : i32
    scf.if %88 {
      %c0_57 = arith.constant 0 : index
      %c0_58 = arith.constant 0 : index
      %89 = vector.load %arg18[%c0_57, %c0_58] : memref<16x128xf32, #tpu.memory_space<vmem>>, vector<16x128xf32>
      %c0_59 = arith.constant 0 : index
      %c0_60 = arith.constant 0 : index
      %90 = vector.load %arg19[%c0_59, %c0_60] : memref<16x128xf32, #tpu.memory_space<vmem>>, vector<16x128xf32>
      %91 = arith.subf %89, %90 : vector<16x128xf32>
      %cst_61 = arith.constant dense<0.000000e+00> : vector<16xf32>
      %92 = vector.multi_reduction <add>, %91, %cst_61 [1] : vector<16x128xf32> to vector<16xf32>
      %93 = vector.shape_cast %92 : vector<16xf32> to vector<16x1xf32>
      %cst_62 = arith.constant dense<0.000000e+00> : vector<1xf32>
      %94 = vector.multi_reduction <add>, %93, %cst_62 [0] : vector<16x1xf32> to vector<1xf32>
      %95 = vector.shape_cast %94 : vector<1xf32> to vector<1x1xf32>
      %96 = vector.shape_cast %95 : vector<1x1xf32> to vector<1x1xf32>
      %97 = vector.broadcast %96 : vector<1x1xf32> to vector<8x128xf32>
      %c0_63 = arith.constant 0 : index
      %c0_64 = arith.constant 0 : index
      %98 = vector.load %arg17[%c0_63, %c0_64] : memref<8x128xf32, #tpu.memory_space<vmem>>, vector<8x128xf32>
      tpu.vector_store %arg17[%c0_63, %c0_64], %97 {strides = array<i32>} : memref<8x128xf32, #tpu.memory_space<vmem>>, vector<8x128xf32>,
    } else {
    }
    return
  }
  func.func @transform_0(%arg0: i32, %arg1: i32) -> (i32, i32) {
    %c2_i32 = arith.constant 2 : i32
    %0 = arith.muli %arg0, %c2_i32 : i32
    %1 = arith.addi %0, %arg1 : i32
    %c0_i32 = arith.constant 0 : i32
    %c0_i32_0 = arith.constant 0 : i32
    return %c0_i32, %1 : i32, i32
  }
  func.func @transform_1(%arg0: i32, %arg1: i32) -> (i32, i32) {
    %c2_i32 = arith.constant 2 : i32
    %0 = arith.muli %arg0, %c2_i32 : i32
    %1 = arith.addi %0, %arg1 : i32
    %c0_i32 = arith.constant 0 : i32
    %c0_i32_0 = arith.constant 0 : i32
    return %c0_i32, %1 : i32, i32
  }
  func.func @transform_2(%arg0: i32, %arg1: i32) -> (i32, i32) {
    %c2_i32 = arith.constant 2 : i32
    %0 = arith.muli %arg0, %c2_i32 : i32
    %1 = arith.addi %0, %arg1 : i32
    %c0_i32 = arith.constant 0 : i32
    %c0_i32_0 = arith.constant 0 : i32
    return %c0_i32, %1 : i32, i32
  }
  func.func @transform_3(%arg0: i32, %arg1: i32) -> (i32, i32) {
    %c0_i32 = arith.constant 0 : i32
    %c0_i32_0 = arith.constant 0 : i32
    %c0_i32_1 = arith.constant 0 : i32
    return %c0_i32, %c0_i32_0 : i32, i32
  }
  func.func @transform_4(%arg0: i32, %arg1: i32) -> (i32, i32) {
    %c0_i32 = arith.constant 0 : i32
    %c0_i32_0 = arith.constant 0 : i32
    %c0_i32_1 = arith.constant 0 : i32
    return %c0_i32, %c0_i32_0 : i32, i32
  }
  func.func @transform_5(%arg0: i32, %arg1: i32) -> (i32, i32) {
    %c0_i32 = arith.constant 0 : i32
    %c0_i32_0 = arith.constant 0 : i32
    %c0_i32_1 = arith.constant 0 : i32
    return %c0_i32, %c0_i32_0 : i32, i32
  }
  func.func @transform_6(%arg0: i32, %arg1: i32) -> (i32, i32) {
    %c0_i32 = arith.constant 0 : i32
    %c0_i32_0 = arith.constant 0 : i32
    %c0_i32_1 = arith.constant 0 : i32
    return %c0_i32, %c0_i32_0 : i32, i32
  }
  func.func @transform_7(%arg0: i32, %arg1: i32) -> (i32, i32) {
    %c0_i32 = arith.constant 0 : i32
    %c0_i32_0 = arith.constant 0 : i32
    %c0_i32_1 = arith.constant 0 : i32
    return %c0_i32, %c0_i32_0 : i32, i32
  }
  func.func @transform_8(%arg0: i32, %arg1: i32) -> (i32, i32) {
    %c0_i32 = arith.constant 0 : i32
    %c0_i32_0 = arith.constant 0 : i32
    %c0_i32_1 = arith.constant 0 : i32
    return %c0_i32, %c0_i32_0 : i32, i32
  }
  func.func @transform_9(%arg0: i32, %arg1: i32) -> (i32, i32) {
    %c0_i32 = arith.constant 0 : i32
    %c0_i32_0 = arith.constant 0 : i32
    %c0_i32_1 = arith.constant 0 : i32
    return %c0_i32, %c0_i32_0 : i32, i32
  }
  func.func @transform_10(%arg0: i32, %arg1: i32) -> (i32, i32) {
    %c0_i32 = arith.constant 0 : i32
    %c0_i32_0 = arith.constant 0 : i32
    %c0_i32_1 = arith.constant 0 : i32
    return %c0_i32, %c0_i32_0 : i32, i32
  }
  func.func @transform_11(%arg0: i32, %arg1: i32) -> (i32, i32) {
    %c0_i32 = arith.constant 0 : i32
    %c0_i32_0 = arith.constant 0 : i32
    %c0_i32_1 = arith.constant 0 : i32
    return %c0_i32, %c0_i32_0 : i32, i32
  }
  func.func @transform_12(%arg0: i32, %arg1: i32) -> (i32, i32) {
    %c0_i32 = arith.constant 0 : i32
    %c0_i32_0 = arith.constant 0 : i32
    %c0_i32_1 = arith.constant 0 : i32
    return %c0_i32, %c0_i32_0 : i32, i32
  }
  func.func @transform_13(%arg0: i32, %arg1: i32) -> (i32, i32) {
    %c0_i32 = arith.constant 0 : i32
    %c0_i32_0 = arith.constant 0 : i32
    %c0_i32_1 = arith.constant 0 : i32
    return %c0_i32, %c0_i32_0 : i32, i32
  }
  func.func @transform_14(%arg0: i32, %arg1: i32) -> (i32, i32) {
    %c0_i32 = arith.constant 0 : i32
    %c0_i32_0 = arith.constant 0 : i32
    %c0_i32_1 = arith.constant 0 : i32
    return %c0_i32, %c0_i32_0 : i32, i32
  }
  func.func @transform_15(%arg0: i32, %arg1: i32) -> (i32, i32) {
    %c0_i32 = arith.constant 0 : i32
    %c0_i32_0 = arith.constant 0 : i32
    return %arg0, %c0_i32 : i32, i32
  }
}

</mosaic_0001>

<llo_original>
// kernel: tpu_custom_call.1
$region0: #{tpu_custom_call.1}
  #allocation0 [shape = 'u32[]', space=smem, size = 0x4, offset = 0x4, fixed_abs, tag = 'smem constant byte address 0x4 - core index']
  #allocation1 [shape = 'u32[144,128]{1,0:T(1,128)}', space=vmem, size = 0x12000, scoped, tag = 'internal scratch']
  #allocation2 [shape = 'f32[16,128]{1,0:T(8,128)}', space=vmem, size = 0x2000, scoped, tag = 'scratch operand']
  #allocation3 [shape = 'f32[16,128]{1,0:T(8,128)}', space=vmem, size = 0x2000, scoped, tag = 'scratch operand']
  #allocation4 [shape = 'bf16[16,256]{1,0:T(8,128)(2,1)}', space=vmem, size = 0x2000, scoped, tag = 'scratch operand']
  %s0 = inlined_call_operand.vmem [shape: f32[16,512], index: 0, kind: input, shape index: {}]
  %s1 = inlined_call_operand.vmem [shape: f32[16,512], index: 1, kind: input, shape index: {}]
  %s2 = inlined_call_operand.vmem [shape: f32[16,512], index: 2, kind: input, shape index: {}]
  %s3 = inlined_call_operand.vmem [shape: bf16[32,16], index: 3, kind: input, shape index: {}]
  %s4 = inlined_call_operand.hbm [shape: bf16[16,32], index: 4, kind: input, shape index: {}]
  %s5 = inlined_call_operand.hbm [shape: bf16[16,32], index: 5, kind: input, shape index: {}]
  %s6 = inlined_call_operand.vmem [shape: bf16[32,16], index: 6, kind: input, shape index: {}]
  %s7 = inlined_call_operand.vmem [shape: f32[32,1], index: 7, kind: input, shape index: {}]
  %s8 = inlined_call_operand.vmem [shape: f32[16,1], index: 8, kind: input, shape index: {}]
  %s9 = inlined_call_operand.vmem [shape: bf16[32,16], index: 9, kind: input, shape index: {}]
  %s10 = inlined_call_operand.hbm [shape: bf16[16,32], index: 10, kind: input, shape index: {}]
  %s11 = inlined_call_operand.hbm [shape: bf16[16,32], index: 11, kind: input, shape index: {}]
  %s12 = inlined_call_operand.vmem [shape: bf16[32,16], index: 12, kind: input, shape index: {}]
  %s13 = inlined_call_operand.vmem [shape: f32[32,1], index: 13, kind: input, shape index: {}]
  %s14 = inlined_call_operand.vmem [shape: f32[16,1], index: 14, kind: input, shape index: {}]
  %s15 = inlined_call_operand.hbm [shape: f32[16,128], index: 15, kind: output, shape index: {}]
  %s16 = sld [smem:[#allocation0]]
  $region231: #{tpu_custom_call.1} parent=0
    _
  %s18 = ssub.s32 1, %s16
  %s19 = scalar_select 0, %s18, %s16
  $region1: #{tpu_custom_call.1} parent=0
    #allocation5 [shape = 'u8[16384]{0}', space=vmem, size = 0x4000, scoped, tag = 'input window, operand 0']
    #allocation6 [shape = 'u8[16384]{0}', space=vmem, size = 0x4000, scoped, tag = 'input window, operand 1']
    #allocation7 [shape = 'u8[16384]{0}', space=vmem, size = 0x4000, scoped, tag = 'input window, operand 2']
    #allocation8 [shape = 'u8[4096]{0}', space=vmem, size = 0x1000, scoped, tag = 'input window, operand 4, single buffered']
    #allocation9 [shape = 's32[2]{0}', space=sflag, size = 0x8, scoped, tag = 'scoped memory for tpu_custom_call.1']
    #allocation10 [shape = 's32[2]{0}', space=sflag, size = 0x8, scoped, tag = 'scoped memory for tpu_custom_call.1']
    #allocation11 [shape = 'u8[4096]{0}', space=vmem, size = 0x1000, scoped, tag = 'input window, operand 5, single buffered']
    #allocation12 [shape = 's32[1]{0}', space=sflag, size = 0x4, scoped, tag = 'scoped memory for tpu_custom_call.1']
    #allocation13 [shape = 'u8[4096]{0}', space=vmem, size = 0x1000, scoped, tag = 'input window, operand 10, single buffered']
    #allocation14 [shape = 'u8[4096]{0}', space=vmem, size = 0x1000, scoped, tag = 'input window, operand 11, single buffered']
    #allocation15 [shape = 's32[1]{0}', space=sflag, size = 0x4, scoped, tag = 'scoped memory for tpu_custom_call.1']
    #allocation16 [shape = 'u8[8192]{0}', space=vmem, size = 0x2000, scoped, tag = 'output window, operand 0']
    %20 = vsyncpa [#allocation9], 0
    %21 = vsyncpa [#allocation12], 0
    %22 = vsyncpa [#allocation15], 0
    %23 = vsyncpa [#allocation10], 0
    %s24 = scalar_lea.sflag [#allocation10], 1
    %25 = vsyncpa %s24, 0
    loop: start=0, step=1, limit=6
    $region2: #{tpu_custom_call.1} parent=1 // loop_pre_header
      _
    $region3: #{tpu_custom_call.1} parent=1 // loop_header
      %s27 = sphi 0, %s31
      %p28 = scmp.ge.s32.totalorder %s27, 6
      %s34 = sphi 0, %s46
      %s35 = sphi 0, %s42
      %s36 = sphi 0, %s34
      %s37 = sphi 0, %s35
      %s38 = sphi 0, %s36
      %s39 = sphi 0, %s37
      %s53 = sphi 0, %s55
      %s56 = sphi 0, %s53
      %s57 = sphi 0, %s56
      %s73 = sphi 0, %s57
      %s83 = sphi 0, %s85
      %s86 = sphi 0, %s83
      %s87 = sphi 0, %s86
      %s103 = sphi 0, %s87
      %s113 = sphi 0, %s115
      %s116 = sphi 0, %s113
      %s117 = sphi 0, %s116
      %s133 = sphi 0, %s117
      %s137 = sphi 0, %s137
      %s139 = sphi 0, %s137
      %s140 = sphi 0, %s139
      %s154 = sphi 0, %s140
      %s158 = sphi 0, %s158
      %s160 = sphi 0, %s158
      %s161 = sphi 0, %s160
      %s175 = sphi 0, %s161
      %s179 = sphi 0, %s179
      %s181 = sphi 0, %s179
      %s182 = sphi 0, %s181
      %s196 = sphi 0, %s182
      %s200 = sphi 0, %s200
      %s202 = sphi 0, %s200
      %s203 = sphi 0, %s202
      %s217 = sphi 0, %s203
      %s221 = sphi 0, %s221
      %s223 = sphi 0, %s221
      %s224 = sphi 0, %s223
      %s238 = sphi 0, %s224
      %s242 = sphi 0, %s242
      %s244 = sphi 0, %s242
      %s245 = sphi 0, %s244
      %s259 = sphi 0, %s245
      %s263 = sphi 0, %s263
      %s265 = sphi 0, %s263
      %s266 = sphi 0, %s265
      %s280 = sphi 0, %s266
      %s284 = sphi 0, %s284
      %s286 = sphi 0, %s284
      %s287 = sphi 0, %s286
      %s301 = sphi 0, %s287
      %s305 = sphi 0, %s305
      %s307 = sphi 0, %s305
      %s308 = sphi 0, %s307
      %s322 = sphi 0, %s308
      %s326 = sphi 0, %s326
      %s328 = sphi 0, %s326
      %s329 = sphi 0, %s328
      %s343 = sphi 0, %s329
      %s347 = sphi 0, %s347
      %s349 = sphi 0, %s347
      %s350 = sphi 0, %s349
      %s364 = sphi 0, %s350
      %s368 = sphi 0, %s368
      %s370 = sphi 0, %s368
      %s371 = sphi 0, %s370
      %s385 = sphi 0, %s371
      %s391 = sphi 0, %s393
      %s394 = sphi 0, %s391
      %s395 = sphi 0, %s394
      %s411 = sphi 0, %s395
    $region4: #{tpu_custom_call.1} parent=1 // loop_header_branch
      %30 = sbr.rel (%p28) target = $region8
    $region5: #{tpu_custom_call.1} parent=1 // loop_body
      %s32 = ssub.s32 %s27, 1
      %s33 = ssub.s32 %s27, 2
      %s40 = sadd.s32 1, %s35
      %p41 = scmp.ge.s32.totalorder %s40, 2
      %s42 = scalar_select %p41, 0, %s40
      %s43 = sadd.s32 1, %s34
      %s44 = scalar_select %p41, %s43, %s34
      %p45 = scmp.ge.s32.totalorder %s44, 2
      %s46 = scalar_select %p45, 0, %s44
      %s47 = smul.u32 %s34, 2
      %s48 = sadd.s32 %s47, %s35
      %s49 = smul.u32 %s46, 2
      %s50 = sadd.s32 %s49, %s42
      %s51 = ssub.s32 %s48, %s50
      %p52 = scmp.eq.s32.totalorder %s51, 0
      %s54 = sadd.s32 %s53, 1
      %s55 = scalar_select %p52, %s53, %s54
      %p58 = pneg %p52
      %p59 = scmp.eq.s32.totalorder %s27, 3
      %p60 = por %p58, %p59
      %p61 = scmp.ne.s32.totalorder %s53, %s56
      %p62 = scmp.eq.s32.totalorder %s27, 0
      %p63 = por %p61, %p62
      %p64 = scmp.ne.s32.totalorder %s53, %s56
      %p65 = scmp.eq.s32.totalorder %s32, 3
      %p66 = por %p64, %p65
      %p67 = scmp.ne.s32.totalorder %s56, %s57
      %p68 = scmp.eq.s32.totalorder %s32, 0
      %p69 = por %p67, %p68
      %p70 = scmp.ne.s32.totalorder %s56, %s57
      %p71 = scmp.eq.s32.totalorder %s33, 3
      %p72 = por %p70, %p71
      %p74 = scmp.ne.s32.totalorder %s57, %s73
      %p75 = scmp.eq.s32.totalorder %s33, 0
      %p76 = por %p74, %p75
      %s77 = smul.u32 %s34, 2
      %s78 = sadd.s32 %s77, %s35
      %s79 = smul.u32 %s46, 2
      %s80 = sadd.s32 %s79, %s42
      %s81 = ssub.s32 %s78, %s80
      %p82 = scmp.eq.s32.totalorder %s81, 0
      %s84 = sadd.s32 %s83, 1
      %s85 = scalar_select %p82, %s83, %s84
      %p88 = pneg %p82
      %p89 = scmp.eq.s32.totalorder %s27, 3
      %p90 = por %p88, %p89
      %p91 = scmp.ne.s32.totalorder %s83, %s86
      %p92 = scmp.eq.s32.totalorder %s27, 0
      %p93 = por %p91, %p92
      %p94 = scmp.ne.s32.totalorder %s83, %s86
      %p95 = scmp.eq.s32.totalorder %s32, 3
      %p96 = por %p94, %p95
      %p97 = scmp.ne.s32.totalorder %s86, %s87
      %p98 = scmp.eq.s32.totalorder %s32, 0
      %p99 = por %p97, %p98
      %p100 = scmp.ne.s32.totalorder %s86, %s87
      %p101 = scmp.eq.s32.totalorder %s33, 3
      %p102 = por %p100, %p101
      %p104 = scmp.ne.s32.totalorder %s87, %s103
      %p105 = scmp.eq.s32.totalorder %s33, 0
      %p106 = por %p104, %p105
      %s107 = smul.u32 %s34, 2
      %s108 = sadd.s32 %s107, %s35
      %s109 = smul.u32 %s46, 2
      %s110 = sadd.s32 %s109, %s42
      %s111 = ssub.s32 %s108, %s110
      %p112 = scmp.eq.s32.totalorder %s111, 0
      %s114 = sadd.s32 %s113, 1
      %s115 = scalar_select %p112, %s113, %s114
      %p118 = pneg %p112
      %p119 = scmp.eq.s32.totalorder %s27, 3
      %p120 = por %p118, %p119
      %p121 = scmp.ne.s32.totalorder %s113, %s116
      %p122 = scmp.eq.s32.totalorder %s27, 0
      %p123 = por %p121, %p122
      %p124 = scmp.ne.s32.totalorder %s113, %s116
      %p125 = scmp.eq.s32.totalorder %s32, 3
      %p126 = por %p124, %p125
      %p127 = scmp.ne.s32.totalorder %s116, %s117
      %p128 = scmp.eq.s32.totalorder %s32, 0
      %p129 = por %p127, %p128
      %p130 = scmp.ne.s32.totalorder %s116, %s117
      %p131 = scmp.eq.s32.totalorder %s33, 3
      %p132 = por %p130, %p131
      %p134 = scmp.ne.s32.totalorder %s117, %s133
      %p135 = scmp.eq.s32.totalorder %s33, 0
      %p136 = por %p134, %p135
      %s138 = sadd.s32 %s137, 1
      %p141 = scmp.eq.s32.totalorder %s27, 3
      %p142 = scmp.ne.s32.totalorder %s137, %s139
      %p143 = scmp.eq.s32.totalorder %s27, 0
      %p144 = por %p142, %p143
      %p145 = scmp.ne.s32.totalorder %s137, %s139
      %p146 = scmp.eq.s32.totalorder %s32, 3
      %p147 = por %p145, %p146
      %p148 = scmp.ne.s32.totalorder %s139, %s140
      %p149 = scmp.eq.s32.totalorder %s32, 0
      %p150 = por %p148, %p149
      %p151 = scmp.ne.s32.totalorder %s139, %s140
      %p152 = scmp.eq.s32.totalorder %s33, 3
      %p153 = por %p151, %p152
      %p155 = scmp.ne.s32.totalorder %s140, %s154
      %p156 = scmp.eq.s32.totalorder %s33, 0
      %p157 = por %p155, %p156
      %s159 = sadd.s32 %s158, 1
      %p162 = scmp.eq.s32.totalorder %s27, 3
      %p163 = scmp.ne.s32.totalorder %s158, %s160
      %p164 = scmp.eq.s32.totalorder %s27, 0
      %p165 = por %p163, %p164
      %p166 = scmp.ne.s32.totalorder %s158, %s160
      %p167 = scmp.eq.s32.totalorder %s32, 3
      %p168 = por %p166, %p167
      %p169 = scmp.ne.s32.totalorder %s160, %s161
      %p170 = scmp.eq.s32.totalorder %s32, 0
      %p171 = por %p169, %p170
      %p172 = scmp.ne.s32.totalorder %s160, %s161
      %p173 = scmp.eq.s32.totalorder %s33, 3
      %p174 = por %p172, %p173
      %p176 = scmp.ne.s32.totalorder %s161, %s175
      %p177 = scmp.eq.s32.totalorder %s33, 0
      %p178 = por %p176, %p177
      %s180 = sadd.s32 %s179, 1
      %p183 = scmp.eq.s32.totalorder %s27, 3
      %p184 = scmp.ne.s32.totalorder %s179, %s181
      %p185 = scmp.eq.s32.totalorder %s27, 0
      %p186 = por %p184, %p185
      %p187 = scmp.ne.s32.totalorder %s179, %s181
      %p188 = scmp.eq.s32.totalorder %s32, 3
      %p189 = por %p187, %p188
      %p190 = scmp.ne.s32.totalorder %s181, %s182
      %p191 = scmp.eq.s32.totalorder %s32, 0
      %p192 = por %p190, %p191
      %p193 = scmp.ne.s32.totalorder %s181, %s182
      %p194 = scmp.eq.s32.totalorder %s33, 3
      %p195 = por %p193, %p194
      %p197 = scmp.ne.s32.totalorder %s182, %s196
      %p198 = scmp.eq.s32.totalorder %s33, 0
      %p199 = por %p197, %p198
      %s201 = sadd.s32 %s200, 1
      %p204 = scmp.eq.s32.totalorder %s27, 3
      %p205 = scmp.ne.s32.totalorder %s200, %s202
      %p206 = scmp.eq.s32.totalorder %s27, 0
      %p207 = por %p205, %p206
      %p208 = scmp.ne.s32.totalorder %s200, %s202
      %p209 = scmp.eq.s32.totalorder %s32, 3
      %p210 = por %p208, %p209
      %p211 = scmp.ne.s32.totalorder %s202, %s203
      %p212 = scmp.eq.s32.totalorder %s32, 0
      %p213 = por %p211, %p212
      %p214 = scmp.ne.s32.totalorder %s202, %s203
      %p215 = scmp.eq.s32.totalorder %s33, 3
      %p216 = por %p214, %p215
      %p218 = scmp.ne.s32.totalorder %s203, %s217
      %p219 = scmp.eq.s32.totalorder %s33, 0
      %p220 = por %p218, %p219
      %s222 = sadd.s32 %s221, 1
      %p225 = scmp.eq.s32.totalorder %s27, 3
      %p226 = scmp.ne.s32.totalorder %s221, %s223
      %p227 = scmp.eq.s32.totalorder %s27, 0
      %p228 = por %p226, %p227
      %p229 = scmp.ne.s32.totalorder %s221, %s223
      %p230 = scmp.eq.s32.totalorder %s32, 3
      %p231 = por %p229, %p230
      %p232 = scmp.ne.s32.totalorder %s223, %s224
      %p233 = scmp.eq.s32.totalorder %s32, 0
      %p234 = por %p232, %p233
      %p235 = scmp.ne.s32.totalorder %s223, %s224
      %p236 = scmp.eq.s32.totalorder %s33, 3
      %p237 = por %p235, %p236
      %p239 = scmp.ne.s32.totalorder %s224, %s238
      %p240 = scmp.eq.s32.totalorder %s33, 0
      %p241 = por %p239, %p240
      %s243 = sadd.s32 %s242, 1
      %p246 = scmp.eq.s32.totalorder %s27, 3
      %p247 = scmp.ne.s32.totalorder %s242, %s244
      %p248 = scmp.eq.s32.totalorder %s27, 0
      %p249 = por %p247, %p248
      %p250 = scmp.ne.s32.totalorder %s242, %s244
      %p251 = scmp.eq.s32.totalorder %s32, 3
      %p252 = por %p250, %p251
      %p253 = scmp.ne.s32.totalorder %s244, %s245
      %p254 = scmp.eq.s32.totalorder %s32, 0
      %p255 = por %p253, %p254
      %p256 = scmp.ne.s32.totalorder %s244, %s245
      %p257 = scmp.eq.s32.totalorder %s33, 3
      %p258 = por %p256, %p257
      %p260 = scmp.ne.s32.totalorder %s245, %s259
      %p261 = scmp.eq.s32.totalorder %s33, 0
      %p262 = por %p260, %p261
      %s264 = sadd.s32 %s263, 1
      %p267 = scmp.eq.s32.totalorder %s27, 3
      %p268 = scmp.ne.s32.totalorder %s263, %s265
      %p269 = scmp.eq.s32.totalorder %s27, 0
      %p270 = por %p268, %p269
      %p271 = scmp.ne.s32.totalorder %s263, %s265
      %p272 = scmp.eq.s32.totalorder %s32, 3
      %p273 = por %p271, %p272
      %p274 = scmp.ne.s32.totalorder %s265, %s266
      %p275 = scmp.eq.s32.totalorder %s32, 0
      %p276 = por %p274, %p275
      %p277 = scmp.ne.s32.totalorder %s265, %s266
      %p278 = scmp.eq.s32.totalorder %s33, 3
      %p279 = por %p277, %p278
      %p281 = scmp.ne.s32.totalorder %s266, %s280
      %p282 = scmp.eq.s32.totalorder %s33, 0
      %p283 = por %p281, %p282
      %s285 = sadd.s32 %s284, 1
      %p288 = scmp.eq.s32.totalorder %s27, 3
      %p289 = scmp.ne.s32.totalorder %s284, %s286
      %p290 = scmp.eq.s32.totalorder %s27, 0
      %p291 = por %p289, %p290
      %p292 = scmp.ne.s32.totalorder %s284, %s286
      %p293 = scmp.eq.s32.totalorder %s32, 3
      %p294 = por %p292, %p293
      %p295 = scmp.ne.s32.totalorder %s286, %s287
      %p296 = scmp.eq.s32.totalorder %s32, 0
      %p297 = por %p295, %p296
      %p298 = scmp.ne.s32.totalorder %s286, %s287
      %p299 = scmp.eq.s32.totalorder %s33, 3
      %p300 = por %p298, %p299
      %p302 = scmp.ne.s32.totalorder %s287, %s301
      %p303 = scmp.eq.s32.totalorder %s33, 0
      %p304 = por %p302, %p303
      %s306 = sadd.s32 %s305, 1
      %p309 = scmp.eq.s32.totalorder %s27, 3
      %p310 = scmp.ne.s32.totalorder %s305, %s307
      %p311 = scmp.eq.s32.totalorder %s27, 0
      %p312 = por %p310, %p311
      %p313 = scmp.ne.s32.totalorder %s305, %s307
      %p314 = scmp.eq.s32.totalorder %s32, 3
      %p315 = por %p313, %p314
      %p316 = scmp.ne.s32.totalorder %s307, %s308
      %p317 = scmp.eq.s32.totalorder %s32, 0
      %p318 = por %p316, %p317
      %p319 = scmp.ne.s32.totalorder %s307, %s308
      %p320 = scmp.eq.s32.totalorder %s33, 3
      %p321 = por %p319, %p320
      %p323 = scmp.ne.s32.totalorder %s308, %s322
      %p324 = scmp.eq.s32.totalorder %s33, 0
      %p325 = por %p323, %p324
      %s327 = sadd.s32 %s326, 1
      %p330 = scmp.eq.s32.totalorder %s27, 3
      %p331 = scmp.ne.s32.totalorder %s326, %s328
      %p332 = scmp.eq.s32.totalorder %s27, 0
      %p333 = por %p331, %p332
      %p334 = scmp.ne.s32.totalorder %s326, %s328
      %p335 = scmp.eq.s32.totalorder %s32, 3
      %p336 = por %p334, %p335
      %p337 = scmp.ne.s32.totalorder %s328, %s329
      %p338 = scmp.eq.s32.totalorder %s32, 0
      %p339 = por %p337, %p338
      %p340 = scmp.ne.s32.totalorder %s328, %s329
      %p341 = scmp.eq.s32.totalorder %s33, 3
      %p342 = por %p340, %p341
      %p344 = scmp.ne.s32.totalorder %s329, %s343
      %p345 = scmp.eq.s32.totalorder %s33, 0
      %p346 = por %p344, %p345
      %s348 = sadd.s32 %s347, 1
      %p351 = scmp.eq.s32.totalorder %s27, 3
      %p352 = scmp.ne.s32.totalorder %s347, %s349
      %p353 = scmp.eq.s32.totalorder %s27, 0
      %p354 = por %p352, %p353
      %p355 = scmp.ne.s32.totalorder %s347, %s349
      %p356 = scmp.eq.s32.totalorder %s32, 3
      %p357 = por %p355, %p356
      %p358 = scmp.ne.s32.totalorder %s349, %s350
      %p359 = scmp.eq.s32.totalorder %s32, 0
      %p360 = por %p358, %p359
      %p361 = scmp.ne.s32.totalorder %s349, %s350
      %p362 = scmp.eq.s32.totalorder %s33, 3
      %p363 = por %p361, %p362
      %p365 = scmp.ne.s32.totalorder %s350, %s364
      %p366 = scmp.eq.s32.totalorder %s33, 0
      %p367 = por %p365, %p366
      %s369 = sadd.s32 %s368, 1
      %p372 = scmp.eq.s32.totalorder %s27, 3
      %p373 = scmp.ne.s32.totalorder %s368, %s370
      %p374 = scmp.eq.s32.totalorder %s27, 0
      %p375 = por %p373, %p374
      %p376 = scmp.ne.s32.totalorder %s368, %s370
      %p377 = scmp.eq.s32.totalorder %s32, 3
      %p378 = por %p376, %p377
      %p379 = scmp.ne.s32.totalorder %s370, %s371
      %p380 = scmp.eq.s32.totalorder %s32, 0
      %p381 = por %p379, %p380
      %p382 = scmp.ne.s32.totalorder %s370, %s371
      %p383 = scmp.eq.s32.totalorder %s33, 3
      %p384 = por %p382, %p383
      %p386 = scmp.ne.s32.totalorder %s371, %s385
      %p387 = scmp.eq.s32.totalorder %s33, 0
      %p388 = por %p386, %p387
      %s389 = ssub.s32 %s34, %s46
      %p390 = scmp.eq.s32.totalorder %s389, 0
      %s392 = sadd.s32 %s391, 1
      %s393 = scalar_select %p390, %s391, %s392
      %p396 = pneg %p390
      %p397 = scmp.eq.s32.totalorder %s27, 3
      %p398 = por %p396, %p397
      %p399 = scmp.ne.s32.totalorder %s391, %s394
      %p400 = scmp.eq.s32.totalorder %s27, 0
      %p401 = por %p399, %p400
      %p402 = scmp.ne.s32.totalorder %s391, %s394
      %p403 = scmp.eq.s32.totalorder %s32, 3
      %p404 = por %p402, %p403
      %p405 = scmp.ne.s32.totalorder %s394, %s395
      %p406 = scmp.eq.s32.totalorder %s32, 0
      %p407 = por %p405, %p406
      %p408 = scmp.ne.s32.totalorder %s394, %s395
      %p409 = scmp.eq.s32.totalorder %s33, 3
      %p410 = por %p408, %p409
      %p412 = scmp.ne.s32.totalorder %s395, %s411
      %p413 = scmp.eq.s32.totalorder %s33, 0
      %p414 = por %p412, %p413
      %p415 = scmp.le.s32.totalorder 1, %s27
      %p416 = scmp.lt.s32.totalorder %s27, 5
      %p417 = pnand %p415, %p416
      %p418 = pneg %p417
      // Predicated region
      $region9: #{tpu_custom_call.1} parent=5 // pred_check
        _
      $region10: #{tpu_custom_call.1} parent=5 // pred_check_branch
        %420 = sbr.rel (%p417) target = $region12
      $region11: #{tpu_custom_call.1} parent=5 // pred_region
        %s421 = ssub.s32 %s27, 1
        // Predicated region
        $region13: #{tpu_custom_call.1} parent=11 // pred_check
          %p422 = pneg %p150
        $region14: #{tpu_custom_call.1} parent=11 // pred_check_branch
          %424 = sbr.rel (%p422) target = $region16
        $region15: #{tpu_custom_call.1} parent=11 // pred_region
          _
        $region16: #{tpu_custom_call.1} parent=11 // pred_fallthru
          _
        // Predicated region
        $region17: #{tpu_custom_call.1} parent=11 // pred_check
          %p425 = pneg %p171
        $region18: #{tpu_custom_call.1} parent=11 // pred_check_branch
          %427 = sbr.rel (%p425) target = $region20
        $region19: #{tpu_custom_call.1} parent=11 // pred_region
          %s429 = ssub.s32 128, 128
          %430 = vsyncadd [#allocation9], %s429
          %s431 = sshll.u32 [#allocation8], 4
          %s432 = int_to_ptr.vmem [resolvable:$true] %s431
          %437 = dma.hbm_to_vmem [thread:$0]  %s4, 128, %s432, [#allocation9], 64, 64, 4
        $region20: #{tpu_custom_call.1} parent=11 // pred_fallthru
          _
        // Predicated region
        $region21: #{tpu_custom_call.1} parent=11 // pred_check
          %p438 = pneg %p192
        $region22: #{tpu_custom_call.1} parent=11 // pred_check_branch
          %440 = sbr.rel (%p438) target = $region24
        $region23: #{tpu_custom_call.1} parent=11 // pred_region
          %s442 = ssub.s32 128, 128
          %443 = vsyncadd [#allocation12], %s442
          %s444 = sshll.u32 [#allocation11], 4
          %s445 = int_to_ptr.vmem [resolvable:$true] %s444
          %450 = dma.hbm_to_vmem [thread:$0]  %s5, 128, %s445, [#allocation12], 64, 64, 4
        $region24: #{tpu_custom_call.1} parent=11 // pred_fallthru
          _
        // Predicated region
        $region25: #{tpu_custom_call.1} parent=11 // pred_check
          %p451 = pneg %p213
        $region26: #{tpu_custom_call.1} parent=11 // pred_check_branch
          %453 = sbr.rel (%p451) target = $region28
        $region27: #{tpu_custom_call.1} parent=11 // pred_region
          _
        $region28: #{tpu_custom_call.1} parent=11 // pred_fallthru
          _
        // Predicated region
        $region29: #{tpu_custom_call.1} parent=11 // pred_check
          %p454 = pneg %p234
        $region30: #{tpu_custom_call.1} parent=11 // pred_check_branch
          %456 = sbr.rel (%p454) target = $region32
        $region31: #{tpu_custom_call.1} parent=11 // pred_region
          _
        $region32: #{tpu_custom_call.1} parent=11 // pred_fallthru
          _
        // Predicated region
        $region33: #{tpu_custom_call.1} parent=11 // pred_check
          %p457 = pneg %p255
        $region34: #{tpu_custom_call.1} parent=11 // pred_check_branch
          %459 = sbr.rel (%p457) target = $region36
        $region35: #{tpu_custom_call.1} parent=11 // pred_region
          _
        $region36: #{tpu_custom_call.1} parent=11 // pred_fallthru
          _
        // Predicated region
        $region37: #{tpu_custom_call.1} parent=11 // pred_check
          %p460 = pneg %p276
        $region38: #{tpu_custom_call.1} parent=11 // pred_check_branch
          %462 = sbr.rel (%p460) target = $region40
        $region39: #{tpu_custom_call.1} parent=11 // pred_region
          _
        $region40: #{tpu_custom_call.1} parent=11 // pred_fallthru
          _
        // Predicated region
        $region41: #{tpu_custom_call.1} parent=11 // pred_check
          %p463 = pneg %p297
        $region42: #{tpu_custom_call.1} parent=11 // pred_check_branch
          %465 = sbr.rel (%p463) target = $region44
        $region43: #{tpu_custom_call.1} parent=11 // pred_region
          %s467 = ssub.s32 128, 128
          %468 = vsyncadd [#allocation12], %s467
          %s469 = sshll.u32 [#allocation13], 4
          %s470 = int_to_ptr.vmem [resolvable:$true] %s469
          %475 = dma.hbm_to_vmem [thread:$0]  %s10, 128, %s470, [#allocation12], 64, 64, 4
        $region44: #{tpu_custom_call.1} parent=11 // pred_fallthru
          _
        // Predicated region
        $region45: #{tpu_custom_call.1} parent=11 // pred_check
          %p476 = pneg %p318
        $region46: #{tpu_custom_call.1} parent=11 // pred_check_branch
          %478 = sbr.rel (%p476) target = $region48
        $region47: #{tpu_custom_call.1} parent=11 // pred_region
          %s480 = ssub.s32 128, 128
          %481 = vsyncadd [#allocation15], %s480
          %s482 = sshll.u32 [#allocation14], 4
          %s483 = int_to_ptr.vmem [resolvable:$true] %s482
          %488 = dma.hbm_to_vmem [thread:$0]  %s11, 128, %s483, [#allocation15], 64, 64, 4
        $region48: #{tpu_custom_call.1} parent=11 // pred_fallthru
          _
        // Predicated region
        $region49: #{tpu_custom_call.1} parent=11 // pred_check
          %p489 = pneg %p339
        $region50: #{tpu_custom_call.1} parent=11 // pred_check_branch
          %491 = sbr.rel (%p489) target = $region52
        $region51: #{tpu_custom_call.1} parent=11 // pred_region
          _
        $region52: #{tpu_custom_call.1} parent=11 // pred_fallthru
          _
        // Predicated region
        $region53: #{tpu_custom_call.1} parent=11 // pred_check
          %p492 = pneg %p360
        $region54: #{tpu_custom_call.1} parent=11 // pred_check_branch
          %494 = sbr.rel (%p492) target = $region56
        $region55: #{tpu_custom_call.1} parent=11 // pred_region
          _
        $region56: #{tpu_custom_call.1} parent=11 // pred_fallthru
          _
        // Predicated region
        $region57: #{tpu_custom_call.1} parent=11 // pred_check
          %p495 = pneg %p381
        $region58: #{tpu_custom_call.1} parent=11 // pred_check_branch
          %497 = sbr.rel (%p495) target = $region60
        $region59: #{tpu_custom_call.1} parent=11 // pred_region
          _
        $region60: #{tpu_custom_call.1} parent=11 // pred_fallthru
          _
      $region12: #{tpu_custom_call.1} parent=5 // pred_fallthru
        _
      %p498 = scmp.lt.s32.totalorder %s27, 4
      // Predicated region
      $region61: #{tpu_custom_call.1} parent=5 // pred_check
        %p499 = pneg %p498
      $region62: #{tpu_custom_call.1} parent=5 // pred_check_branch
        %501 = sbr.rel (%p499) target = $region64
      $region63: #{tpu_custom_call.1} parent=5 // pred_region
        // Predicated region
        $region65: #{tpu_custom_call.1} parent=63 // pred_check
          %p502 = pneg %p63
        $region66: #{tpu_custom_call.1} parent=63 // pred_check_branch
          %504 = sbr.rel (%p502) target = $region68
        $region67: #{tpu_custom_call.1} parent=63 // pred_region
          %s505 = sand.u32 %s53, 1
          %s506 = sand.u32 %s53, 1
          %s507 = smul.addr %s506, 16
          %s508 = scalar_lea.vmem [#allocation5], %s507
          %s509 = smul.u32 %s34, 2
          %s510 = sadd.s32 %s509, %s35
          %s511 = smul.addr %s510, 8
          %s512 = scalar_lea.vmem %s0, %s511
          // Predicated region
          $region69: #{tpu_custom_call.1} parent=67 // pred_check
            _
          $region70: #{tpu_custom_call.1} parent=67 // pred_check_branch
            %514 = sbr.rel (0) target = $region72
          $region71: #{tpu_custom_call.1} parent=67 // pred_region
            // Predicated region
            $region73: #{tpu_custom_call.1} parent=71 // pred_check
              _
            $region74: #{tpu_custom_call.1} parent=71 // pred_check_branch
              %516 = sbr.rel (0) target = $region76
            $region75: #{tpu_custom_call.1} parent=71 // pred_region
              // Predicated region
              $region88: #{tpu_custom_call.1} parent=75 // pred_check
                _
              $region89: #{tpu_custom_call.1} parent=75 // pred_check_branch
                %534 = sbr.rel (0) target = $region91
              $region90: #{tpu_custom_call.1} parent=75 // pred_region
                loop: start=0, step=1, limit=1
                $region92: #{tpu_custom_call.1} parent=90 // loop_pre_header
                  _
                $region93: #{tpu_custom_call.1} parent=90 // loop_header
                  %s536 = sphi 0, %s540
                  %p537 = scmp.ge.s32.totalorder %s536, 1
                  %s541 = sphi %s512, %s512
                  %s542 = sphi %s508, %s508
                $region94: #{tpu_custom_call.1} parent=90 // loop_header_branch
                  %539 = sbr.rel (%p537) target = $region98
                $region95: #{tpu_custom_call.1} parent=90 // loop_body
                  %v543 = vld [vmem:[%s541] sm:$0xff]
                  %544 = vst [vmem:[%s542] sm:$0xff] %v543
                  %v545 = vld [vmem:[%s541 + $0x20] sm:$0xff]
                  %546 = vst [vmem:[%s542 + $0x8] sm:$0xff] %v545
                $region96: #{tpu_custom_call.1} parent=90 // loop_footer
                  %s540 = sadd.s32 1, %s536
                $region97: #{tpu_custom_call.1} parent=90 // loop_footer_branch
                  %535 = sbr.rel target = $region93
                $region98: #{tpu_custom_call.1} parent=90 // loop_exit
                  _
              $region91: #{tpu_custom_call.1} parent=75 // pred_fallthru
                _
              // Predicated region
              $region99: #{tpu_custom_call.1} parent=75 // pred_check
                _
              $region100: #{tpu_custom_call.1} parent=75 // pred_check_branch
                %548 = sbr.rel target = $region102
              $region101: #{tpu_custom_call.1} parent=75 // pred_region
                _
              $region102: #{tpu_custom_call.1} parent=75 // pred_fallthru
                _
            $region76: #{tpu_custom_call.1} parent=71 // pred_fallthru
              _
            // Predicated region
            $region77: #{tpu_custom_call.1} parent=71 // pred_check
              _
            $region78: #{tpu_custom_call.1} parent=71 // pred_check_branch
              %518 = sbr.rel target = $region80
            $region79: #{tpu_custom_call.1} parent=71 // pred_region
              %s520 = ssub.s32 256, 1
              loop: start=0, step=1, limit=1
              $region81: #{tpu_custom_call.1} parent=79 // loop_pre_header
                _
              $region82: #{tpu_custom_call.1} parent=79 // loop_header
                %s522 = sphi 0, %s526
                %p523 = scmp.ge.s32.totalorder %s522, 1
                %s527 = sphi %s512, %s512
                %s528 = sphi %s508, %s508
              $region83: #{tpu_custom_call.1} parent=79 // loop_header_branch
                %525 = sbr.rel (%p523) target = $region87
              $region84: #{tpu_custom_call.1} parent=79 // loop_body
                %v529 = vld [vmem:[%s527] sm:%s520]
                %530 = vst [vmem:[%s528] sm:%s520] %v529
                %v531 = vld [vmem:[%s527 + $0x20] sm:%s520]
                %532 = vst [vmem:[%s528 + $0x8] sm:%s520] %v531
              $region85: #{tpu_custom_call.1} parent=79 // loop_footer
                %s526 = sadd.s32 1, %s522
              $region86: #{tpu_custom_call.1} parent=79 // loop_footer_branch
                %521 = sbr.rel target = $region82
              $region87: #{tpu_custom_call.1} parent=79 // loop_exit
                _
            $region80: #{tpu_custom_call.1} parent=71 // pred_fallthru
              _
          $region72: #{tpu_custom_call.1} parent=67 // pred_fallthru
            _
          %549 = vnop
        $region68: #{tpu_custom_call.1} parent=63 // pred_fallthru
          _
        // Predicated region
        $region103: #{tpu_custom_call.1} parent=63 // pred_check
          %p550 = pneg %p93
        $region104: #{tpu_custom_call.1} parent=63 // pred_check_branch
          %552 = sbr.rel (%p550) target = $region106
        $region105: #{tpu_custom_call.1} parent=63 // pred_region
          %s553 = sand.u32 %s83, 1
          %s554 = sand.u32 %s83, 1
          %s555 = smul.addr %s554, 16
          %s556 = scalar_lea.vmem [#allocation6], %s555
          %s557 = smul.u32 %s34, 2
          %s558 = sadd.s32 %s557, %s35
          %s559 = smul.addr %s558, 8
          %s560 = scalar_lea.vmem %s1, %s559
          // Predicated region
          $region107: #{tpu_custom_call.1} parent=105 // pred_check
            _
          $region108: #{tpu_custom_call.1} parent=105 // pred_check_branch
            %562 = sbr.rel (0) target = $region110
          $region109: #{tpu_custom_call.1} parent=105 // pred_region
            // Predicated region
            $region111: #{tpu_custom_call.1} parent=109 // pred_check
              _
            $region112: #{tpu_custom_call.1} parent=109 // pred_check_branch
              %564 = sbr.rel (0) target = $region114
            $region113: #{tpu_custom_call.1} parent=109 // pred_region
              // Predicated region
              $region126: #{tpu_custom_call.1} parent=113 // pred_check
                _
              $region127: #{tpu_custom_call.1} parent=113 // pred_check_branch
                %582 = sbr.rel (0) target = $region129
              $region128: #{tpu_custom_call.1} parent=113 // pred_region
                loop: start=0, step=1, limit=1
                $region130: #{tpu_custom_call.1} parent=128 // loop_pre_header
                  _
                $region131: #{tpu_custom_call.1} parent=128 // loop_header
                  %s584 = sphi 0, %s588
                  %p585 = scmp.ge.s32.totalorder %s584, 1
                  %s589 = sphi %s560, %s560
                  %s590 = sphi %s556, %s556
                $region132: #{tpu_custom_call.1} parent=128 // loop_header_branch
                  %587 = sbr.rel (%p585) target = $region136
                $region133: #{tpu_custom_call.1} parent=128 // loop_body
                  %v591 = vld [vmem:[%s589] sm:$0xff]
                  %592 = vst [vmem:[%s590] sm:$0xff] %v591
                  %v593 = vld [vmem:[%s589 + $0x20] sm:$0xff]
                  %594 = vst [vmem:[%s590 + $0x8] sm:$0xff] %v593
                $region134: #{tpu_custom_call.1} parent=128 // loop_footer
                  %s588 = sadd.s32 1, %s584
                $region135: #{tpu_custom_call.1} parent=128 // loop_footer_branch
                  %583 = sbr.rel target = $region131
                $region136: #{tpu_custom_call.1} parent=128 // loop_exit
                  _
              $region129: #{tpu_custom_call.1} parent=113 // pred_fallthru
                _
              // Predicated region
              $region137: #{tpu_custom_call.1} parent=113 // pred_check
                _
              $region138: #{tpu_custom_call.1} parent=113 // pred_check_branch
                %596 = sbr.rel target = $region140
              $region139: #{tpu_custom_call.1} parent=113 // pred_region
                _
              $region140: #{tpu_custom_call.1} parent=113 // pred_fallthru
                _
            $region114: #{tpu_custom_call.1} parent=109 // pred_fallthru
              _
            // Predicated region
            $region115: #{tpu_custom_call.1} parent=109 // pred_check
              _
            $region116: #{tpu_custom_call.1} parent=109 // pred_check_branch
              %566 = sbr.rel target = $region118
            $region117: #{tpu_custom_call.1} parent=109 // pred_region
              %s568 = ssub.s32 256, 1
              loop: start=0, step=1, limit=1
              $region119: #{tpu_custom_call.1} parent=117 // loop_pre_header
                _
              $region120: #{tpu_custom_call.1} parent=117 // loop_header
                %s570 = sphi 0, %s574
                %p571 = scmp.ge.s32.totalorder %s570, 1
                %s575 = sphi %s560, %s560
                %s576 = sphi %s556, %s556
              $region121: #{tpu_custom_call.1} parent=117 // loop_header_branch
                %573 = sbr.rel (%p571) target = $region125
              $region122: #{tpu_custom_call.1} parent=117 // loop_body
                %v577 = vld [vmem:[%s575] sm:%s568]
                %578 = vst [vmem:[%s576] sm:%s568] %v577
                %v579 = vld [vmem:[%s575 + $0x20] sm:%s568]
                %580 = vst [vmem:[%s576 + $0x8] sm:%s568] %v579
              $region123: #{tpu_custom_call.1} parent=117 // loop_footer
                %s574 = sadd.s32 1, %s570
              $region124: #{tpu_custom_call.1} parent=117 // loop_footer_branch
                %569 = sbr.rel target = $region120
              $region125: #{tpu_custom_call.1} parent=117 // loop_exit
                _
            $region118: #{tpu_custom_call.1} parent=109 // pred_fallthru
              _
          $region110: #{tpu_custom_call.1} parent=105 // pred_fallthru
            _
          %597 = vnop
        $region106: #{tpu_custom_call.1} parent=63 // pred_fallthru
          _
        // Predicated region
        $region141: #{tpu_custom_call.1} parent=63 // pred_check
          %p598 = pneg %p123
        $region142: #{tpu_custom_call.1} parent=63 // pred_check_branch
          %600 = sbr.rel (%p598) target = $region144
        $region143: #{tpu_custom_call.1} parent=63 // pred_region
          %s601 = sand.u32 %s113, 1
          %s602 = sand.u32 %s113, 1
          %s603 = smul.addr %s602, 16
          %s604 = scalar_lea.vmem [#allocation7], %s603
          %s605 = smul.u32 %s34, 2
          %s606 = sadd.s32 %s605, %s35
          %s607 = smul.addr %s606, 8
          %s608 = scalar_lea.vmem %s2, %s607
          // Predicated region
          $region145: #{tpu_custom_call.1} parent=143 // pred_check
            _
          $region146: #{tpu_custom_call.1} parent=143 // pred_check_branch
            %610 = sbr.rel (0) target = $region148
          $region147: #{tpu_custom_call.1} parent=143 // pred_region
            // Predicated region
            $region149: #{tpu_custom_call.1} parent=147 // pred_check
              _
            $region150: #{tpu_custom_call.1} parent=147 // pred_check_branch
              %612 = sbr.rel (0) target = $region152
            $region151: #{tpu_custom_call.1} parent=147 // pred_region
              // Predicated region
              $region164: #{tpu_custom_call.1} parent=151 // pred_check
                _
              $region165: #{tpu_custom_call.1} parent=151 // pred_check_branch
                %630 = sbr.rel (0) target = $region167
              $region166: #{tpu_custom_call.1} parent=151 // pred_region
                loop: start=0, step=1, limit=1
                $region168: #{tpu_custom_call.1} parent=166 // loop_pre_header
                  _
                $region169: #{tpu_custom_call.1} parent=166 // loop_header
                  %s632 = sphi 0, %s636
                  %p633 = scmp.ge.s32.totalorder %s632, 1
                  %s637 = sphi %s608, %s608
                  %s638 = sphi %s604, %s604
                $region170: #{tpu_custom_call.1} parent=166 // loop_header_branch
                  %635 = sbr.rel (%p633) target = $region174
                $region171: #{tpu_custom_call.1} parent=166 // loop_body
                  %v639 = vld [vmem:[%s637] sm:$0xff]
                  %640 = vst [vmem:[%s638] sm:$0xff] %v639
                  %v641 = vld [vmem:[%s637 + $0x20] sm:$0xff]
                  %642 = vst [vmem:[%s638 + $0x8] sm:$0xff] %v641
                $region172: #{tpu_custom_call.1} parent=166 // loop_footer
                  %s636 = sadd.s32 1, %s632
                $region173: #{tpu_custom_call.1} parent=166 // loop_footer_branch
                  %631 = sbr.rel target = $region169
                $region174: #{tpu_custom_call.1} parent=166 // loop_exit
                  _
              $region167: #{tpu_custom_call.1} parent=151 // pred_fallthru
                _
              // Predicated region
              $region175: #{tpu_custom_call.1} parent=151 // pred_check
                _
              $region176: #{tpu_custom_call.1} parent=151 // pred_check_branch
                %644 = sbr.rel target = $region178
              $region177: #{tpu_custom_call.1} parent=151 // pred_region
                _
              $region178: #{tpu_custom_call.1} parent=151 // pred_fallthru
                _
            $region152: #{tpu_custom_call.1} parent=147 // pred_fallthru
              _
            // Predicated region
            $region153: #{tpu_custom_call.1} parent=147 // pred_check
              _
            $region154: #{tpu_custom_call.1} parent=147 // pred_check_branch
              %614 = sbr.rel target = $region156
            $region155: #{tpu_custom_call.1} parent=147 // pred_region
              %s616 = ssub.s32 256, 1
              loop: start=0, step=1, limit=1
              $region157: #{tpu_custom_call.1} parent=155 // loop_pre_header
                _
              $region158: #{tpu_custom_call.1} parent=155 // loop_header
                %s618 = sphi 0, %s622
                %p619 = scmp.ge.s32.totalorder %s618, 1
                %s623 = sphi %s608, %s608
                %s624 = sphi %s604, %s604
              $region159: #{tpu_custom_call.1} parent=155 // loop_header_branch
                %621 = sbr.rel (%p619) target = $region163
              $region160: #{tpu_custom_call.1} parent=155 // loop_body
                %v625 = vld [vmem:[%s623] sm:%s616]
                %626 = vst [vmem:[%s624] sm:%s616] %v625
                %v627 = vld [vmem:[%s623 + $0x20] sm:%s616]
                %628 = vst [vmem:[%s624 + $0x8] sm:%s616] %v627
              $region161: #{tpu_custom_call.1} parent=155 // loop_footer
                %s622 = sadd.s32 1, %s618
              $region162: #{tpu_custom_call.1} parent=155 // loop_footer_branch
                %617 = sbr.rel target = $region158
              $region163: #{tpu_custom_call.1} parent=155 // loop_exit
                _
            $region156: #{tpu_custom_call.1} parent=147 // pred_fallthru
              _
          $region148: #{tpu_custom_call.1} parent=143 // pred_fallthru
            _
          %645 = vnop
        $region144: #{tpu_custom_call.1} parent=63 // pred_fallthru
          _
      $region64: #{tpu_custom_call.1} parent=5 // pred_fallthru
        _
      %p646 = scmp.le.s32.totalorder 1, %s27
      %p647 = scmp.lt.s32.totalorder %s27, 5
      %p648 = pnand %p646, %p647
      %p649 = pneg %p648
      // Predicated region
      $region179: #{tpu_custom_call.1} parent=5 // pred_check
        _
      $region180: #{tpu_custom_call.1} parent=5 // pred_check_branch
        %651 = sbr.rel (%p648) target = $region182
      $region181: #{tpu_custom_call.1} parent=5 // pred_region
        %s652 = ssub.s32 %s27, 1
        %s653 = sand.u32 %s56, 1
        %s654 = sand.u32 %s56, 1
        %s655 = smul.addr %s654, 16
        %s656 = scalar_lea.vmem [#allocation5], %s655
        // Predicated region
        $region183: #{tpu_custom_call.1} parent=181 // pred_check
          %p657 = pneg %p69
        $region184: #{tpu_custom_call.1} parent=181 // pred_check_branch
          %659 = sbr.rel (%p657) target = $region186
        $region185: #{tpu_custom_call.1} parent=181 // pred_region
          _
        $region186: #{tpu_custom_call.1} parent=181 // pred_fallthru
          _
        %s660 = sand.u32 %s86, 1
        %s661 = sand.u32 %s86, 1
        %s662 = smul.addr %s661, 16
        %s663 = scalar_lea.vmem [#allocation6], %s662
        // Predicated region
        $region187: #{tpu_custom_call.1} parent=181 // pred_check
          %p664 = pneg %p99
        $region188: #{tpu_custom_call.1} parent=181 // pred_check_branch
          %666 = sbr.rel (%p664) target = $region190
        $region189: #{tpu_custom_call.1} parent=181 // pred_region
          _
        $region190: #{tpu_custom_call.1} parent=181 // pred_fallthru
          _
        %s667 = sand.u32 %s116, 1
        %s668 = sand.u32 %s116, 1
        %s669 = smul.addr %s668, 16
        %s670 = scalar_lea.vmem [#allocation7], %s669
        // Predicated region
        $region191: #{tpu_custom_call.1} parent=181 // pred_check
          %p671 = pneg %p129
        $region192: #{tpu_custom_call.1} parent=181 // pred_check_branch
          %673 = sbr.rel (%p671) target = $region194
        $region193: #{tpu_custom_call.1} parent=181 // pred_region
          _
        $region194: #{tpu_custom_call.1} parent=181 // pred_fallthru
          _
        // Predicated region
        $region195: #{tpu_custom_call.1} parent=181 // pred_check
          %p674 = pneg %p171
        $region196: #{tpu_custom_call.1} parent=181 // pred_check_branch
          %676 = sbr.rel (%p674) target = $region198
        $region197: #{tpu_custom_call.1} parent=181 // pred_region
          %677 = dma.done [#allocation9], 128
        $region198: #{tpu_custom_call.1} parent=181 // pred_fallthru
          _
        // Predicated region
        $region199: #{tpu_custom_call.1} parent=181 // pred_check
          %p678 = pneg %p192
        $region200: #{tpu_custom_call.1} parent=181 // pred_check_branch
          %680 = sbr.rel (%p678) target = $region202
        $region201: #{tpu_custom_call.1} parent=181 // pred_region
          %681 = dma.done [#allocation12], 128
        $region202: #{tpu_custom_call.1} parent=181 // pred_fallthru
          _
        // Predicated region
        $region203: #{tpu_custom_call.1} parent=181 // pred_check
          %p682 = pneg %p297
        $region204: #{tpu_custom_call.1} parent=181 // pred_check_branch
          %684 = sbr.rel (%p682) target = $region206
        $region205: #{tpu_custom_call.1} parent=181 // pred_region
          %685 = dma.done [#allocation12], 128
        $region206: #{tpu_custom_call.1} parent=181 // pred_fallthru
          _
        // Predicated region
        $region207: #{tpu_custom_call.1} parent=181 // pred_check
          %p686 = pneg %p318
        $region208: #{tpu_custom_call.1} parent=181 // pred_check_branch
          %688 = sbr.rel (%p686) target = $region210
        $region209: #{tpu_custom_call.1} parent=181 // pred_region
          %689 = dma.done [#allocation15], 128
        $region210: #{tpu_custom_call.1} parent=181 // pred_fallthru
          _
        %s690 = sand.u32 %s56, 1
        %s691 = sand.u32 %s56, 1
        %s692 = smul.addr %s691, 16
        %s693 = scalar_lea.vmem [#allocation5], %s692
        %p694 = pneg %p69
        %p695 = pneg %p66
        %s696 = sand.u32 %s86, 1
        %s697 = sand.u32 %s86, 1
        %s698 = smul.addr %s697, 16
        %s699 = scalar_lea.vmem [#allocation6], %s698
        %p700 = pneg %p99
        %p701 = pneg %p96
        %s702 = sand.u32 %s116, 1
        %s703 = sand.u32 %s116, 1
        %s704 = smul.addr %s703, 16
        %s705 = scalar_lea.vmem [#allocation7], %s704
        %p706 = pneg %p129
        %p707 = pneg %p126
        %p708 = pneg %p150
        %p709 = pneg %p147
        %p710 = pneg %p171
        %p711 = pneg %p168
        %p712 = pneg %p192
        %p713 = pneg %p189
        %p714 = pneg %p213
        %p715 = pneg %p210
        %p716 = pneg %p234
        %p717 = pneg %p231
        %p718 = pneg %p255
        %p719 = pneg %p252
        %p720 = pneg %p276
        %p721 = pneg %p273
        %p722 = pneg %p297
        %p723 = pneg %p294
        %p724 = pneg %p318
        %p725 = pneg %p315
        %p726 = pneg %p339
        %p727 = pneg %p336
        %p728 = pneg %p360
        %p729 = pneg %p357
        %p730 = pneg %p381
        %p731 = pneg %p378
        %p732 = pneg %p407
        %p733 = pneg %p404
        %s734 = sand.u32 %s394, 1
        %s735 = scalar_lea.sflag [#allocation10], %s734
        %s736 = sand.u32 %s394, 1
        %s737 = smul.addr %s736, 8
        %s738 = scalar_lea.vmem [#allocation16], %s737
        %s739 = smul.u32 %s36, 2
        %s740 = sadd.s32 %s739, %s37
        %s741 = smul.u32 %s36, 2
        %s742 = sadd.s32 %s741, %s37
        %s743 = smul.u32 %s36, 2
        %s744 = sadd.s32 %s743, %s37
        %p746 = scmp.eq.s32.totalorder %s37, 0
        // Predicated region
        $region211: #{tpu_custom_call.1} parent=181 // pred_check
          %p747 = pneg %p746
        $region212: #{tpu_custom_call.1} parent=181 // pred_check_branch
          %749 = sbr.rel (%p747) target = $region214
        $region213: #{tpu_custom_call.1} parent=181 // pred_region
          %750 = vst [vmem:[#allocation2] sm:$0xff] 0.0
          %751 = vst [vmem:[#allocation2 + $0x8] sm:$0xff] 0.0
          %752 = vst [vmem:[#allocation3] sm:$0xff] 0.0
          %753 = vst [vmem:[#allocation3 + $0x8] sm:$0xff] 0.0
        $region214: #{tpu_custom_call.1} parent=181 // pred_fallthru
          _
        %v754 = vld [vmem:[%s656] sm:$0xff]
        %v755 = vld [vmem:[%s656 + $0x8] sm:$0xff]
        %v756 = vld [vmem:[%s663] sm:$0xff]
        %v757 = vld [vmem:[%s663 + $0x8] sm:$0xff]
        %v758 = vld [vmem:[%s670] sm:$0xff]
        %v759 = vld [vmem:[%s670 + $0x8] sm:$0xff]
        %v760 = vld [vmem:[%s3] sm:$0xf]
        %v761 = vld [vmem:[%s3 + $0x4] sm:$0xf]
        %v762 = vld [vmem:[%s3 + $0x8] sm:$0xf]
        %v763 = vld [vmem:[%s3 + $0xc] sm:$0xf]
        %v764 = vld [vmem:[#allocation8] sm:$0xf]
        %v765 = vld [vmem:[#allocation8 + $0x4] sm:$0xf]
        %v766 = vld [vmem:[%s9] sm:$0xf]
        %v767 = vld [vmem:[%s9 + $0x4] sm:$0xf]
        %v768 = vld [vmem:[%s9 + $0x8] sm:$0xf]
        %v769 = vld [vmem:[%s9 + $0xc] sm:$0xf]
        %v770 = vld [vmem:[#allocation13] sm:$0xf]
        %v771 = vld [vmem:[#allocation13 + $0x4] sm:$0xf]
        %v772 = vld [vmem:[#allocation11] sm:$0xf]
        %v773 = vld [vmem:[#allocation11 + $0x4] sm:$0xf]
        %v774 = vld [vmem:[%s6] sm:$0xf]
        %v775 = vld [vmem:[%s6 + $0x4] sm:$0xf]
        %v776 = vld [vmem:[%s6 + $0x8] sm:$0xf]
        %v777 = vld [vmem:[%s6 + $0xc] sm:$0xf]
        %v778 = vld [vmem:[#allocation14] sm:$0xf]
        %v779 = vld [vmem:[#allocation14 + $0x4] sm:$0xf]
        %v780 = vld [vmem:[%s12] sm:$0xf]
        %v781 = vld [vmem:[%s12 + $0x4] sm:$0xf]
        %v782 = vld [vmem:[%s12 + $0x8] sm:$0xf]
        %v783 = vld [vmem:[%s12 + $0xc] sm:$0xf]
        %v784 = vld [vmem:[%s7] sm:$0xff]
        %v785 = vld [vmem:[%s7 + $0x8] sm:$0xff]
        %v786 = vld [vmem:[%s7 + $0x10] sm:$0xff]
        %v787 = vld [vmem:[%s7 + $0x18] sm:$0xff]
        %v788 = vld [vmem:[%s8] sm:$0xff]
        %v789 = vld [vmem:[%s8 + $0x8] sm:$0xff]
        %v790 = vld [vmem:[%s13] sm:$0xff]
        %v791 = vld [vmem:[%s13 + $0x8] sm:$0xff]
        %v792 = vld [vmem:[%s13 + $0x10] sm:$0xff]
        %v793 = vld [vmem:[%s13 + $0x18] sm:$0xff]
        %v794 = vld [vmem:[%s14] sm:$0xff]
        %v795 = vld [vmem:[%s14 + $0x8] sm:$0xff]
        %v796 = vpack.c.bf16 %v759, %v758
        %798 = vset.pattern.permute.xlu0 0
        %799 = vperm.xlu0 %798, %v790
        %v800 = vpop.permute.xlu0 %799
        %803 = vset.pattern.permute.xlu0 0
        %804 = vperm.xlu0 %803, %v791
        %v805 = vpop.permute.xlu0 %804
        %808 = vset.pattern.permute.xlu0 0
        %809 = vperm.xlu0 %808, %v792
        %v810 = vpop.permute.xlu0 %809
        %813 = vset.pattern.permute.xlu0 0
        %814 = vperm.xlu0 %813, %v793
        %v815 = vpop.permute.xlu0 %814
        %v821 = vunpack.c.l.b16 %v766
        %v822 = vunpack.c.l.b16 %v767
        %v823 = vunpack.c.l.b16 %v768
        %v824 = vunpack.c.l.b16 %v769
        %v825 = vpack.c.b16 %v822, %v821
        %v826 = vpack.c.b16 %v824, %v823
        %vm827 = vcmask 130048
        %v829 = vsel %vm827, %v825, 0
        %v832 = vsel %vm827, %v826, 0
        %834 = vmatprep.subr.bf16.mxu0 0
        %835 = vmatpush1.bf16.msra.mxu0 0
        %836 = vmatprep.subr.bf16.mxu0 0
        %837 = vmatpush1.bf16.msra.mxu0 0
        %838 = vmatprep.subr.bf16.mxu0 0
        %839 = vmatpush1.bf16.msra.mxu0 0
        %840 = vmatprep.subr.bf16.mxu0 0
        %841 = vmatpush1.bf16.msra.mxu0 0
        %842 = vmatprep.subr.bf16.mxu0 0
        %843 = vmatpush1.bf16.msra.mxu0 0
        %844 = vmatprep.subr.bf16.mxu0 0
        %845 = vmatpush1.bf16.msra.mxu0 0
        %846 = vmatprep.subr.bf16.mxu0 0
        %847 = vmatpush1.bf16.msra.mxu0 0
        %848 = vmatprep.subr.bf16.mxu0 0
        %849 = vmatpush1.bf16.msra.mxu0 %v796
        %850 = vmatprep.subr.bf16.mxu0 0
        %851 = vmatpush2.bf16.msra.mxu0 0
        %852 = vmatprep.subr.bf16.mxu0 0
        %853 = vmatpush2.bf16.msra.mxu0 0
        %854 = vmatprep.subr.bf16.mxu0 0
        %855 = vmatpush2.bf16.msra.mxu0 0
        %856 = vmatprep.subr.bf16.mxu0 0
        %857 = vmatpush2.bf16.msra.mxu0 0
        %858 = vmatprep.subr.bf16.mxu0 0
        %859 = vmatpush2.bf16.msra.mxu0 0
        %860 = vmatprep.subr.bf16.mxu0 0
        %861 = vmatpush2.bf16.msra.mxu0 0
        %862 = vmatprep.subr.bf16.mxu0 0
        %863 = vmatpush2.bf16.msra.mxu0 0
        %864 = vmatprep.subr.bf16.mxu0 0
        %865 = vmatpush2.bf16.msra.mxu0 0
        %866 = vmatprep.mubr.bf16.mxu0 0
        %867 = vmatmul.mubr.bf16.gmra.mxu0 %v829
        %v868 = vpop.f32.mrf.mxu0
        %v869 = vadd.f32 %v800, %v868
        %v870 = vpop.f32.mrf.mxu0
        %v871 = vpop.f32.mrf.mxu0
        %v872 = vadd.f32 %v805, %v871
        %v873 = vpop.f32.mrf.mxu0
        %874 = vmatprep.mubr.bf16.mxu0 0
        %875 = vmatmul.mubr.bf16.gmra.mxu0 %v832
        %v876 = vpop.f32.mrf.mxu0
        %v877 = vadd.f32 %v810, %v876
        %v878 = vpop.f32.mrf.mxu0
        %v879 = vpop.f32.mrf.mxu0
        %v880 = vadd.f32 %v815, %v879
        %v881 = vpop.f32.mrf.mxu0
        %882 = vdwg.mxu0
        %v883 = vtanh.pop %v869
        %v884 = vtanh.pop %v872
        %v885 = vtanh.pop %v877
        %v886 = vtanh.pop %v880
        %v887 = vpack.c.bf16 %v884, %v883
        %v888 = vpack.c.bf16 %v886, %v885
        %890 = vset.pattern.permute.xlu0 0
        %891 = vperm.xlu0 %890, %v794
        %v892 = vpop.permute.xlu0 %891
        %895 = vset.pattern.permute.xlu0 0
        %896 = vperm.xlu0 %895, %v795
        %v897 = vpop.permute.xlu0 %896
        %v901 = vunpack.c.l.b16 %v770
        %v902 = vunpack.c.l.b16 %v771
        %v903 = vpack.c.b16 %v902, %v901
        %vm904 = vcmask 261120
        %v906 = vsel %vm904, %v903, 0
        %908 = vmatprep.subr.bf16.mxu0 0
        %909 = vmatpush1.bf16.msra.mxu0 0
        %910 = vmatprep.subr.bf16.mxu0 0
        %911 = vmatpush1.bf16.msra.mxu0 0
        %912 = vmatprep.subr.bf16.mxu0 0
        %913 = vmatpush1.bf16.msra.mxu0 0
        %914 = vmatprep.subr.bf16.mxu0 0
        %915 = vmatpush1.bf16.msra.mxu0 0
        %916 = vmatprep.subr.bf16.mxu0 0
        %917 = vmatpush1.bf16.msra.mxu0 0
        %918 = vmatprep.subr.bf16.mxu0 0
        %919 = vmatpush1.bf16.msra.mxu0 0
        %920 = vmatprep.subr.bf16.mxu0 0
        %921 = vmatpush1.bf16.msra.mxu0 %v888
        %922 = vmatprep.subr.bf16.mxu0 0
        %923 = vmatpush1.bf16.msra.mxu0 %v887
        %924 = vmatprep.subr.bf16.mxu0 0
        %925 = vmatpush2.bf16.msra.mxu0 0
        %926 = vmatprep.subr.bf16.mxu0 0
        %927 = vmatpush2.bf16.msra.mxu0 0
        %928 = vmatprep.subr.bf16.mxu0 0
        %929 = vmatpush2.bf16.msra.mxu0 0
        %930 = vmatprep.subr.bf16.mxu0 0
        %931 = vmatpush2.bf16.msra.mxu0 0
        %932 = vmatprep.subr.bf16.mxu0 0
        %933 = vmatpush2.bf16.msra.mxu0 0
        %934 = vmatprep.subr.bf16.mxu0 0
        %935 = vmatpush2.bf16.msra.mxu0 0
        %936 = vmatprep.subr.bf16.mxu0 0
        %937 = vmatpush2.bf16.msra.mxu0 0
        %938 = vmatprep.subr.bf16.mxu0 0
        %939 = vmatpush2.bf16.msra.mxu0 0
        %940 = vmatprep.mubr.bf16.mxu0 0
        %941 = vmatmul.mubr.bf16.gmra.mxu0 %v906
        %v942 = vpop.f32.mrf.mxu0
        %v943 = vadd.f32 %v892, %v942
        %v944 = vpop.f32.mrf.mxu0
        %v945 = vpop.f32.mrf.mxu0
        %v946 = vadd.f32 %v897, %v945
        %v947 = vpop.f32.mrf.mxu0
        %948 = vdwg.mxu0
        %v949 = vpack.c.bf16 %v755, %v754
        %v951 = vunpack.c.l.b16 %v949
        %v952 = vunpack.c.h.b16 %v949
        %v953 = vpack.c.b16 %v951, %v951
        %v954 = vpack.c.b16 %v952, %v952
        %957 = vst [vmem:[#allocation4] sm:$0xf] %v953
        %958 = vst [vmem:[#allocation4 + $0x8] sm:$0xf] %v954
        %v959 = vpack.c.bf16 %v946, %v943
        %v961 = vunpack.c.l.b16 %v959
        %v962 = vunpack.c.h.b16 %v959
        %v963 = vpack.c.b16 %v961, %v961
        %v964 = vpack.c.b16 %v962, %v962
        %967 = vst [vmem:[#allocation4 + $0x4] sm:$0xf] %v963
        %968 = vst [vmem:[#allocation4 + $0xc] sm:$0xf] %v964
        %v969 = vld [vmem:[#allocation4] sm:$0xff]
        %v970 = vld [vmem:[#allocation4 + $0x8] sm:$0xff]
        %972 = vset.pattern.permute.xlu0 0
        %973 = vperm.xlu0 %972, %v784
        %v974 = vpop.permute.xlu0 %973
        %977 = vset.pattern.permute.xlu0 0
        %978 = vperm.xlu0 %977, %v785
        %v979 = vpop.permute.xlu0 %978
        %982 = vset.pattern.permute.xlu0 0
        %983 = vperm.xlu0 %982, %v786
        %v984 = vpop.permute.xlu0 %983
        %987 = vset.pattern.permute.xlu0 0
        %988 = vperm.xlu0 %987, %v787
        %v989 = vpop.permute.xlu0 %988
        %v995 = vunpack.c.l.b16 %v760
        %v996 = vunpack.c.l.b16 %v761
        %v997 = vunpack.c.l.b16 %v762
        %v998 = vunpack.c.l.b16 %v763
        %v999 = vpack.c.b16 %v996, %v995
        %v1000 = vpack.c.b16 %v998, %v997
        %v1003 = vunpack.c.l.b16 %v969
        %v1004 = vunpack.c.h.b16 %v969
        %v1005 = vunpack.c.l.b16 %v970
        %v1006 = vunpack.c.h.b16 %v970
        %v1007 = vpack.c.b16 %v1005, %v1003
        %v1008 = vpack.c.b16 %v1006, %v1004
        %v1012 = vsel %vm827, %v999, 0
        %v1015 = vsel %vm827, %v1000, 0
        %1017 = vmatprep.subr.bf16.mxu0 0
        %1018 = vmatpush1.bf16.msra.mxu0 0
        %1019 = vmatprep.subr.bf16.mxu0 0
        %1020 = vmatpush1.bf16.msra.mxu0 0
        %1021 = vmatprep.subr.bf16.mxu0 0
        %1022 = vmatpush1.bf16.msra.mxu0 0
        %1023 = vmatprep.subr.bf16.mxu0 0
        %1024 = vmatpush1.bf16.msra.mxu0 0
        %1025 = vmatprep.subr.bf16.mxu0 0
        %1026 = vmatpush1.bf16.msra.mxu0 0
        %1027 = vmatprep.subr.bf16.mxu0 0
        %1028 = vmatpush1.bf16.msra.mxu0 0
        %1029 = vmatprep.subr.bf16.mxu0 0
        %1030 = vmatpush1.bf16.msra.mxu0 0
        %1031 = vmatprep.subr.bf16.mxu0 %v1008
        %1032 = vmatpush1.bf16.msra.mxu0 %v1007
        %1033 = vmatprep.subr.bf16.mxu0 0
        %1034 = vmatpush2.bf16.msra.mxu0 0
        %1035 = vmatprep.subr.bf16.mxu0 0
        %1036 = vmatpush2.bf16.msra.mxu0 0
        %1037 = vmatprep.subr.bf16.mxu0 0
        %1038 = vmatpush2.bf16.msra.mxu0 0
        %1039 = vmatprep.subr.bf16.mxu0 0
        %1040 = vmatpush2.bf16.msra.mxu0 0
        %1041 = vmatprep.subr.bf16.mxu0 0
        %1042 = vmatpush2.bf16.msra.mxu0 0
        %1043 = vmatprep.subr.bf16.mxu0 0
        %1044 = vmatpush2.bf16.msra.mxu0 0
        %1045 = vmatprep.subr.bf16.mxu0 0
        %1046 = vmatpush2.bf16.msra.mxu0 0
        %1047 = vmatprep.subr.bf16.mxu0 0
        %1048 = vmatpush2.bf16.msra.mxu0 0
        %1049 = vmatprep.mubr.bf16.mxu0 0
        %1050 = vmatmul.mubr.bf16.gmra.mxu0 %v1012
        %v1051 = vpop.f32.mrf.mxu0
        %v1052 = vadd.f32 %v974, %v1051
        %v1053 = vpop.f32.mrf.mxu0
        %v1054 = vadd.f32 %v974, %v1053
        %v1055 = vpop.f32.mrf.mxu0
        %v1056 = vadd.f32 %v979, %v1055
        %v1057 = vpop.f32.mrf.mxu0
        %v1058 = vadd.f32 %v979, %v1057
        %1059 = vmatprep.mubr.bf16.mxu0 0
        %1060 = vmatmul.mubr.bf16.gmra.mxu0 %v1015
        %v1061 = vpop.f32.mrf.mxu0
        %v1062 = vadd.f32 %v984, %v1061
        %v1063 = vpop.f32.mrf.mxu0
        %v1064 = vadd.f32 %v984, %v1063
        %v1065 = vpop.f32.mrf.mxu0
        %v1066 = vadd.f32 %v989, %v1065
        %v1067 = vpop.f32.mrf.mxu0
        %v1068 = vadd.f32 %v989, %v1067
        %1069 = vdwg.mxu0
        %v1070 = vtanh.pop %v1052
        %v1071 = vtanh.pop %v1054
        %v1072 = vtanh.pop %v1056
        %v1073 = vtanh.pop %v1058
        %v1074 = vtanh.pop %v1062
        %v1075 = vtanh.pop %v1064
        %v1076 = vtanh.pop %v1066
        %v1077 = vtanh.pop %v1068
        %v1078 = vpack.c.bf16 %v1072, %v1070
        %v1079 = vpack.c.bf16 %v1073, %v1071
        %v1080 = vpack.c.bf16 %v1076, %v1074
        %v1081 = vpack.c.bf16 %v1077, %v1075
        %1083 = vset.pattern.permute.xlu0 0
        %1084 = vperm.xlu0 %1083, %v788
        %v1085 = vpop.permute.xlu0 %1084
        %1088 = vset.pattern.permute.xlu0 0
        %1089 = vperm.xlu0 %1088, %v789
        %v1090 = vpop.permute.xlu0 %1089
        %v1094 = vunpack.c.l.b16 %v764
        %v1095 = vunpack.c.l.b16 %v765
        %v1096 = vpack.c.b16 %v1095, %v1094
        %v1098 = vsel %vm904, %v1096, 0
        %1100 = vmatprep.subr.bf16.mxu0 0
        %1101 = vmatpush1.bf16.msra.mxu0 0
        %1102 = vmatprep.subr.bf16.mxu0 0
        %1103 = vmatpush1.bf16.msra.mxu0 0
        %1104 = vmatprep.subr.bf16.mxu0 0
        %1105 = vmatpush1.bf16.msra.mxu0 0
        %1106 = vmatprep.subr.bf16.mxu0 0
        %1107 = vmatpush1.bf16.msra.mxu0 0
        %1108 = vmatprep.subr.bf16.mxu0 0
        %1109 = vmatpush1.bf16.msra.mxu0 0
        %1110 = vmatprep.subr.bf16.mxu0 0
        %1111 = vmatpush1.bf16.msra.mxu0 0
        %1112 = vmatprep.subr.bf16.mxu0 %v1081
        %1113 = vmatpush1.bf16.msra.mxu0 %v1080
        %1114 = vmatprep.subr.bf16.mxu0 %v1079
        %1115 = vmatpush1.bf16.msra.mxu0 %v1078
        %1116 = vmatprep.subr.bf16.mxu0 0
        %1117 = vmatpush2.bf16.msra.mxu0 0
        %1118 = vmatprep.subr.bf16.mxu0 0
        %1119 = vmatpush2.bf16.msra.mxu0 0
        %1120 = vmatprep.subr.bf16.mxu0 0
        %1121 = vmatpush2.bf16.msra.mxu0 0
        %1122 = vmatprep.subr.bf16.mxu0 0
        %1123 = vmatpush2.bf16.msra.mxu0 0
        %1124 = vmatprep.subr.bf16.mxu0 0
        %1125 = vmatpush2.bf16.msra.mxu0 0
        %1126 = vmatprep.subr.bf16.mxu0 0
        %1127 = vmatpush2.bf16.msra.mxu0 0
        %1128 = vmatprep.subr.bf16.mxu0 0
        %1129 = vmatpush2.bf16.msra.mxu0 0
        %1130 = vmatprep.subr.bf16.mxu0 0
        %1131 = vmatpush2.bf16.msra.mxu0 0
        %1132 = vmatprep.mubr.bf16.mxu0 0
        %1133 = vmatmul.mubr.bf16.gmra.mxu0 %v1098
        %v1134 = vpop.f32.mrf.mxu0
        %v1135 = vadd.f32 %v1085, %v1134
        %v1136 = vpop.f32.mrf.mxu0
        %v1137 = vadd.f32 %v1085, %v1136
        %v1138 = vpop.f32.mrf.mxu0
        %v1139 = vadd.f32 %v1090, %v1138
        %v1140 = vpop.f32.mrf.mxu0
        %v1141 = vadd.f32 %v1090, %v1140
        %1142 = vdwg.mxu0
        %v1143 = vpack.c.bf16 %v1139, %v1135
        %1144 = vmatprep.subr.bf16.mxu0 0
        %1145 = vmatpush1.bf16.msra.mxu0 0
        %1146 = vmatprep.subr.bf16.mxu0 0
        %1147 = vmatpush1.bf16.msra.mxu0 0
        %1148 = vmatprep.subr.bf16.mxu0 0
        %1149 = vmatpush1.bf16.msra.mxu0 0
        %1150 = vmatprep.subr.bf16.mxu0 0
        %1151 = vmatpush1.bf16.msra.mxu0 0
        %1152 = vmatprep.subr.bf16.mxu0 0
        %1153 = vmatpush1.bf16.msra.mxu0 0
        %1154 = vmatprep.subr.bf16.mxu0 0
        %1155 = vmatpush1.bf16.msra.mxu0 0
        %1156 = vmatprep.subr.bf16.mxu0 0
        %1157 = vmatpush1.bf16.msra.mxu0 0
        %1158 = vmatprep.subr.bf16.mxu0 0
        %1159 = vmatpush1.bf16.msra.mxu0 %v1143
        %1160 = vmatprep.subr.bf16.mxu0 0
        %1161 = vmatpush2.bf16.msra.mxu0 0
        %1162 = vmatprep.subr.bf16.mxu0 0
        %1163 = vmatpush2.bf16.msra.mxu0 0
        %1164 = vmatprep.subr.bf16.mxu0 0
        %1165 = vmatpush2.bf16.msra.mxu0 0
        %1166 = vmatprep.subr.bf16.mxu0 0
        %1167 = vmatpush2.bf16.msra.mxu0 0
        %1168 = vmatprep.subr.bf16.mxu0 0
        %1169 = vmatpush2.bf16.msra.mxu0 0
        %1170 = vmatprep.subr.bf16.mxu0 0
        %1171 = vmatpush2.bf16.msra.mxu0 0
        %1172 = vmatprep.subr.bf16.mxu0 0
        %1173 = vmatpush2.bf16.msra.mxu0 0
        %1174 = vmatprep.subr.bf16.mxu0 0
        %1175 = vmatpush2.bf16.msra.mxu0 0
        %1176 = vmatprep.mubr.bf16.mxu0 0
        %1177 = vmatmul.mubr.bf16.gmra.mxu0 %v829
        %v1178 = vpop.f32.mrf.mxu0
        %v1179 = vadd.f32 %v800, %v1178
        %v1180 = vpop.f32.mrf.mxu0
        %v1181 = vpop.f32.mrf.mxu0
        %v1182 = vadd.f32 %v805, %v1181
        %v1183 = vpop.f32.mrf.mxu0
        %1184 = vmatprep.mubr.bf16.mxu0 0
        %1185 = vmatmul.mubr.bf16.gmra.mxu0 %v832
        %v1186 = vpop.f32.mrf.mxu0
        %v1187 = vadd.f32 %v810, %v1186
        %v1188 = vpop.f32.mrf.mxu0
        %v1189 = vpop.f32.mrf.mxu0
        %v1190 = vadd.f32 %v815, %v1189
        %v1191 = vpop.f32.mrf.mxu0
        %1192 = vdwg.mxu0
        %v1193 = vtanh.pop %v1179
        %v1194 = vtanh.pop %v1182
        %v1195 = vtanh.pop %v1187
        %v1196 = vtanh.pop %v1190
        %v1197 = vpack.c.bf16 %v1194, %v1193
        %v1198 = vpack.c.bf16 %v1196, %v1195
        %1199 = vmatprep.subr.bf16.mxu0 0
        %1200 = vmatpush1.bf16.msra.mxu0 0
        %1201 = vmatprep.subr.bf16.mxu0 0
        %1202 = vmatpush1.bf16.msra.mxu0 0
        %1203 = vmatprep.subr.bf16.mxu0 0
        %1204 = vmatpush1.bf16.msra.mxu0 0
        %1205 = vmatprep.subr.bf16.mxu0 0
        %1206 = vmatpush1.bf16.msra.mxu0 0
        %1207 = vmatprep.subr.bf16.mxu0 0
        %1208 = vmatpush1.bf16.msra.mxu0 0
        %1209 = vmatprep.subr.bf16.mxu0 0
        %1210 = vmatpush1.bf16.msra.mxu0 0
        %1211 = vmatprep.subr.bf16.mxu0 0
        %1212 = vmatpush1.bf16.msra.mxu0 %v1198
        %1213 = vmatprep.subr.bf16.mxu0 0
        %1214 = vmatpush1.bf16.msra.mxu0 %v1197
        %1215 = vmatprep.subr.bf16.mxu0 0
        %1216 = vmatpush2.bf16.msra.mxu0 0
        %1217 = vmatprep.subr.bf16.mxu0 0
        %1218 = vmatpush2.bf16.msra.mxu0 0
        %1219 = vmatprep.subr.bf16.mxu0 0
        %1220 = vmatpush2.bf16.msra.mxu0 0
        %1221 = vmatprep.subr.bf16.mxu0 0
        %1222 = vmatpush2.bf16.msra.mxu0 0
        %1223 = vmatprep.subr.bf16.mxu0 0
        %1224 = vmatpush2.bf16.msra.mxu0 0
        %1225 = vmatprep.subr.bf16.mxu0 0
        %1226 = vmatpush2.bf16.msra.mxu0 0
        %1227 = vmatprep.subr.bf16.mxu0 0
        %1228 = vmatpush2.bf16.msra.mxu0 0
        %1229 = vmatprep.subr.bf16.mxu0 0
        %1230 = vmatpush2.bf16.msra.mxu0 0
        %1231 = vmatprep.mubr.bf16.mxu0 0
        %1232 = vmatmul.mubr.bf16.gmra.mxu0 %v906
        %v1233 = vpop.f32.mrf.mxu0
        %v1234 = vadd.f32 %v892, %v1233
        %v1235 = vpop.f32.mrf.mxu0
        %v1236 = vpop.f32.mrf.mxu0
        %v1237 = vadd.f32 %v897, %v1236
        %v1238 = vpop.f32.mrf.mxu0
        %1239 = vdwg.mxu0
        %v1240 = vpack.c.bf16 %v757, %v756
        %v1245 = vunpack.c.l.b16 %v780
        %v1246 = vunpack.c.l.b16 %v781
        %v1247 = vunpack.c.l.b16 %v782
        %v1248 = vunpack.c.l.b16 %v783
        %v1249 = vpack.c.b16 %v1246, %v1245
        %v1250 = vpack.c.b16 %v1248, %v1247
        %v1252 = vsel %vm827, %v1249, 0
        %v1255 = vsel %vm827, %v1250, 0
        %1257 = vmatprep.subr.bf16.mxu0 0
        %1258 = vmatpush1.bf16.msra.mxu0 0
        %1259 = vmatprep.subr.bf16.mxu0 0
        %1260 = vmatpush1.bf16.msra.mxu0 0
        %1261 = vmatprep.subr.bf16.mxu0 0
        %1262 = vmatpush1.bf16.msra.mxu0 0
        %1263 = vmatprep.subr.bf16.mxu0 0
        %1264 = vmatpush1.bf16.msra.mxu0 0
        %1265 = vmatprep.subr.bf16.mxu0 0
        %1266 = vmatpush1.bf16.msra.mxu0 0
        %1267 = vmatprep.subr.bf16.mxu0 0
        %1268 = vmatpush1.bf16.msra.mxu0 0
        %1269 = vmatprep.subr.bf16.mxu0 0
        %1270 = vmatpush1.bf16.msra.mxu0 0
        %1271 = vmatprep.subr.bf16.mxu0 0
        %1272 = vmatpush1.bf16.msra.mxu0 %v1240
        %1273 = vmatprep.subr.bf16.mxu0 0
        %1274 = vmatpush2.bf16.msra.mxu0 0
        %1275 = vmatprep.subr.bf16.mxu0 0
        %1276 = vmatpush2.bf16.msra.mxu0 0
        %1277 = vmatprep.subr.bf16.mxu0 0
        %1278 = vmatpush2.bf16.msra.mxu0 0
        %1279 = vmatprep.subr.bf16.mxu0 0
        %1280 = vmatpush2.bf16.msra.mxu0 0
        %1281 = vmatprep.subr.bf16.mxu0 0
        %1282 = vmatpush2.bf16.msra.mxu0 0
        %1283 = vmatprep.subr.bf16.mxu0 0
        %1284 = vmatpush2.bf16.msra.mxu0 0
        %1285 = vmatprep.subr.bf16.mxu0 0
        %1286 = vmatpush2.bf16.msra.mxu0 0
        %1287 = vmatprep.subr.bf16.mxu0 0
        %1288 = vmatpush2.bf16.msra.mxu0 0
        %1289 = vmatprep.mubr.bf16.mxu0 0
        %1290 = vmatmul.mubr.bf16.gmra.mxu0 %v1252
        %v1291 = vpop.f32.mrf.mxu0
        %v1292 = vadd.f32 0.0, %v1291
        %v1293 = vpop.f32.mrf.mxu0
        %v1294 = vpop.f32.mrf.mxu0
        %v1295 = vadd.f32 0.0, %v1294
        %v1296 = vpop.f32.mrf.mxu0
        %1297 = vmatprep.mubr.bf16.mxu0 0
        %1298 = vmatmul.mubr.bf16.gmra.mxu0 %v1255
        %v1299 = vpop.f32.mrf.mxu0
        %v1300 = vadd.f32 0.0, %v1299
        %v1301 = vpop.f32.mrf.mxu0
        %v1302 = vpop.f32.mrf.mxu0
        %v1303 = vadd.f32 0.0, %v1302
        %v1304 = vpop.f32.mrf.mxu0
        %1305 = vdwg.mxu0
        %v1306 = vmul.f32 %v1193, %v1193
        %v1307 = vmul.f32 %v1194, %v1194
        %v1308 = vmul.f32 %v1195, %v1195
        %v1309 = vmul.f32 %v1196, %v1196
        %v1310 = vsub.f32 1.0, %v1306
        %v1311 = vsub.f32 1.0, %v1307
        %v1312 = vsub.f32 1.0, %v1308
        %v1313 = vsub.f32 1.0, %v1309
        %v1314 = vmul.f32 %v1292, %v1310
        %v1315 = vmul.f32 %v1295, %v1311
        %v1316 = vmul.f32 %v1300, %v1312
        %v1317 = vmul.f32 %v1303, %v1313
        %v1318 = vpack.c.bf16 %v1315, %v1314
        %v1319 = vpack.c.bf16 %v1317, %v1316
        %v1322 = vunpack.c.l.b16 %v778
        %v1323 = vunpack.c.l.b16 %v779
        %v1324 = vpack.c.b16 %v1323, %v1322
        %v1326 = vsel %vm904, %v1324, 0
        %1328 = vmatprep.subr.bf16.mxu0 0
        %1329 = vmatpush1.bf16.msra.mxu0 0
        %1330 = vmatprep.subr.bf16.mxu0 0
        %1331 = vmatpush1.bf16.msra.mxu0 0
        %1332 = vmatprep.subr.bf16.mxu0 0
        %1333 = vmatpush1.bf16.msra.mxu0 0
        %1334 = vmatprep.subr.bf16.mxu0 0
        %1335 = vmatpush1.bf16.msra.mxu0 0
        %1336 = vmatprep.subr.bf16.mxu0 0
        %1337 = vmatpush1.bf16.msra.mxu0 0
        %1338 = vmatprep.subr.bf16.mxu0 0
        %1339 = vmatpush1.bf16.msra.mxu0 0
        %1340 = vmatprep.subr.bf16.mxu0 0
        %1341 = vmatpush1.bf16.msra.mxu0 %v1319
        %1342 = vmatprep.subr.bf16.mxu0 0
        %1343 = vmatpush1.bf16.msra.mxu0 %v1318
        %1344 = vmatprep.subr.bf16.mxu0 0
        %1345 = vmatpush2.bf16.msra.mxu0 0
        %1346 = vmatprep.subr.bf16.mxu0 0
        %1347 = vmatpush2.bf16.msra.mxu0 0
        %1348 = vmatprep.subr.bf16.mxu0 0
        %1349 = vmatpush2.bf16.msra.mxu0 0
        %1350 = vmatprep.subr.bf16.mxu0 0
        %1351 = vmatpush2.bf16.msra.mxu0 0
        %1352 = vmatprep.subr.bf16.mxu0 0
        %1353 = vmatpush2.bf16.msra.mxu0 0
        %1354 = vmatprep.subr.bf16.mxu0 0
        %1355 = vmatpush2.bf16.msra.mxu0 0
        %1356 = vmatprep.subr.bf16.mxu0 0
        %1357 = vmatpush2.bf16.msra.mxu0 0
        %1358 = vmatprep.subr.bf16.mxu0 0
        %1359 = vmatpush2.bf16.msra.mxu0 0
        %1360 = vmatprep.mubr.bf16.mxu0 0
        %1361 = vmatmul.mubr.bf16.gmra.mxu0 %v1326
        %v1362 = vpop.f32.mrf.mxu0
        %v1363 = vadd.f32 0.0, %v1362
        %v1364 = vpop.f32.mrf.mxu0
        %v1365 = vpop.f32.mrf.mxu0
        %v1366 = vadd.f32 0.0, %v1365
        %v1367 = vpop.f32.mrf.mxu0
        %1368 = vdwg.mxu0
        %v1369 = vpack.c.bf16 %v1366, %v1363
        %v1374 = vunpack.c.l.b16 %v774
        %v1375 = vunpack.c.l.b16 %v775
        %v1376 = vunpack.c.l.b16 %v776
        %v1377 = vunpack.c.l.b16 %v777
        %v1378 = vpack.c.b16 %v1375, %v1374
        %v1379 = vpack.c.b16 %v1377, %v1376
        %v1381 = vsel %vm827, %v1378, 0
        %v1384 = vsel %vm827, %v1379, 0
        %1386 = vmatprep.subr.bf16.mxu0 0
        %1387 = vmatpush1.bf16.msra.mxu0 0
        %1388 = vmatprep.subr.bf16.mxu0 0
        %1389 = vmatpush1.bf16.msra.mxu0 0
        %1390 = vmatprep.subr.bf16.mxu0 0
        %1391 = vmatpush1.bf16.msra.mxu0 0
        %1392 = vmatprep.subr.bf16.mxu0 0
        %1393 = vmatpush1.bf16.msra.mxu0 0
        %1394 = vmatprep.subr.bf16.mxu0 0
        %1395 = vmatpush1.bf16.msra.mxu0 0
        %1396 = vmatprep.subr.bf16.mxu0 0
        %1397 = vmatpush1.bf16.msra.mxu0 0
        %1398 = vmatprep.subr.bf16.mxu0 0
        %1399 = vmatpush1.bf16.msra.mxu0 0
        %1400 = vmatprep.subr.bf16.mxu0 0
        %1401 = vmatpush1.bf16.msra.mxu0 %v1369
        %1402 = vmatprep.subr.bf16.mxu0 0
        %1403 = vmatpush2.bf16.msra.mxu0 0
        %1404 = vmatprep.subr.bf16.mxu0 0
        %1405 = vmatpush2.bf16.msra.mxu0 0
        %1406 = vmatprep.subr.bf16.mxu0 0
        %1407 = vmatpush2.bf16.msra.mxu0 0
        %1408 = vmatprep.subr.bf16.mxu0 0
        %1409 = vmatpush2.bf16.msra.mxu0 0
        %1410 = vmatprep.subr.bf16.mxu0 0
        %1411 = vmatpush2.bf16.msra.mxu0 0
        %1412 = vmatprep.subr.bf16.mxu0 0
        %1413 = vmatpush2.bf16.msra.mxu0 0
        %1414 = vmatprep.subr.bf16.mxu0 0
        %1415 = vmatpush2.bf16.msra.mxu0 0
        %1416 = vmatprep.subr.bf16.mxu0 0
        %1417 = vmatpush2.bf16.msra.mxu0 0
        %1418 = vmatprep.mubr.bf16.mxu0 0
        %1419 = vmatmul.mubr.bf16.gmra.mxu0 %v1381
        %v1420 = vpop.f32.mrf.mxu0
        %v1421 = vadd.f32 0.0, %v1420
        %v1422 = vpop.f32.mrf.mxu0
        %v1423 = vpop.f32.mrf.mxu0
        %v1424 = vadd.f32 0.0, %v1423
        %v1425 = vpop.f32.mrf.mxu0
        %1426 = vmatprep.mubr.bf16.mxu0 0
        %1427 = vmatmul.mubr.bf16.gmra.mxu0 %v1384
        %v1428 = vpop.f32.mrf.mxu0
        %v1429 = vadd.f32 0.0, %v1428
        %v1430 = vpop.f32.mrf.mxu0
        %v1431 = vpop.f32.mrf.mxu0
        %v1432 = vadd.f32 0.0, %v1431
        %v1433 = vpop.f32.mrf.mxu0
        %1434 = vdwg.mxu0
        %v1435 = vmul.f32 %v1070, %v1070
        %v1436 = vmul.f32 %v1072, %v1072
        %v1437 = vmul.f32 %v1074, %v1074
        %v1438 = vmul.f32 %v1076, %v1076
        %v1439 = vsub.f32 1.0, %v1435
        %v1440 = vsub.f32 1.0, %v1436
        %v1441 = vsub.f32 1.0, %v1437
        %v1442 = vsub.f32 1.0, %v1438
        %v1443 = vmul.f32 %v1421, %v1439
        %v1444 = vmul.f32 %v1424, %v1440
        %v1445 = vmul.f32 %v1429, %v1441
        %v1446 = vmul.f32 %v1432, %v1442
        %v1447 = vpack.c.bf16 %v1444, %v1443
        %v1448 = vpack.c.bf16 %v1446, %v1445
        %v1451 = vunpack.c.l.b16 %v772
        %v1452 = vunpack.c.l.b16 %v773
        %v1453 = vpack.c.b16 %v1452, %v1451
        %v1455 = vsel %vm904, %v1453, 0
        %1457 = vmatprep.subr.bf16.mxu0 0
        %1458 = vmatpush1.bf16.msra.mxu0 0
        %1459 = vmatprep.subr.bf16.mxu0 0
        %1460 = vmatpush1.bf16.msra.mxu0 0
        %1461 = vmatprep.subr.bf16.mxu0 0
        %1462 = vmatpush1.bf16.msra.mxu0 0
        %1463 = vmatprep.subr.bf16.mxu0 0
        %1464 = vmatpush1.bf16.msra.mxu0 0
        %1465 = vmatprep.subr.bf16.mxu0 0
        %1466 = vmatpush1.bf16.msra.mxu0 0
        %1467 = vmatprep.subr.bf16.mxu0 0
        %1468 = vmatpush1.bf16.msra.mxu0 0
        %1469 = vmatprep.subr.bf16.mxu0 0
        %1470 = vmatpush1.bf16.msra.mxu0 %v1448
        %1471 = vmatprep.subr.bf16.mxu0 0
        %1472 = vmatpush1.bf16.msra.mxu0 %v1447
        %1473 = vmatprep.subr.bf16.mxu0 0
        %1474 = vmatpush2.bf16.msra.mxu0 0
        %1475 = vmatprep.subr.bf16.mxu0 0
        %1476 = vmatpush2.bf16.msra.mxu0 0
        %1477 = vmatprep.subr.bf16.mxu0 0
        %1478 = vmatpush2.bf16.msra.mxu0 0
        %1479 = vmatprep.subr.bf16.mxu0 0
        %1480 = vmatpush2.bf16.msra.mxu0 0
        %1481 = vmatprep.subr.bf16.mxu0 0
        %1482 = vmatpush2.bf16.msra.mxu0 0
        %1483 = vmatprep.subr.bf16.mxu0 0
        %1484 = vmatpush2.bf16.msra.mxu0 0
        %1485 = vmatprep.subr.bf16.mxu0 0
        %1486 = vmatpush2.bf16.msra.mxu0 0
        %1487 = vmatprep.subr.bf16.mxu0 0
        %1488 = vmatpush2.bf16.msra.mxu0 0
        %1489 = vmatprep.mubr.bf16.mxu0 0
        %1490 = vmatmul.mubr.bf16.gmra.mxu0 %v1455
        %v1491 = vpop.f32.mrf.mxu0
        %v1492 = vadd.f32 0.0, %v1491
        %v1493 = vpop.f32.mrf.mxu0
        %v1494 = vpop.f32.mrf.mxu0
        %v1495 = vadd.f32 0.0, %v1494
        %v1496 = vpop.f32.mrf.mxu0
        %1497 = vdwg.mxu0
        %v1498 = vsub.f32 %v1234, %v754
        %v1499 = vsub.f32 %v1237, %v755
        %v1500 = vsub.f32 %v758, %v1137
        %v1501 = vsub.f32 %v759, %v1141
        %v1502 = vld [vmem:[#allocation2] sm:$0xff]
        %v1503 = vld [vmem:[#allocation2 + $0x8] sm:$0xff]
        %v1504 = vmul.f32 %v1498, %v1498
        %v1505 = vmul.f32 %v1499, %v1499
        %v1506 = vmul.f32 %v1500, %v1500
        %v1507 = vmul.f32 %v1501, %v1501
        %v1508 = vadd.f32 %v1504, %v1506
        %v1509 = vadd.f32 %v1505, %v1507
        %v1510 = vmul.f32 %v1508, 10.0
        %v1511 = vmul.f32 %v1509, 10.0
        %v1512 = vmul.f32 %v1135, %v1135
        %v1513 = vmul.f32 %v1139, %v1139
        %v1514 = vmul.f32 %v1512, 0.5
        %v1515 = vmul.f32 %v1513, 0.5
        %v1516 = vadd.f32 %v1510, %v1514
        %v1517 = vadd.f32 %v1511, %v1515
        %v1518 = vadd.f32 %v1502, %v1516
        %v1519 = vadd.f32 %v1503, %v1517
        %1520 = vst [vmem:[#allocation2] sm:$0xff] %v1518
        %1521 = vst [vmem:[#allocation2 + $0x8] sm:$0xff] %v1519
        %v1522 = vld [vmem:[#allocation3] sm:$0xff]
        %v1523 = vld [vmem:[#allocation3 + $0x8] sm:$0xff]
        %v1524 = vmul.f32 %v756, %v1492
        %v1525 = vmul.f32 %v757, %v1495
        %v1526 = vadd.f32 %v1522, %v1524
        %v1527 = vadd.f32 %v1523, %v1525
        %1528 = vst [vmem:[#allocation3] sm:$0xff] %v1526
        %1529 = vst [vmem:[#allocation3 + $0x8] sm:$0xff] %v1527
        %p1530 = scmp.eq.s32.totalorder %s37, 1
        // Predicated region
        $region215: #{tpu_custom_call.1} parent=181 // pred_check
          %p1531 = pneg %p1530
        $region216: #{tpu_custom_call.1} parent=181 // pred_check_branch
          %1533 = sbr.rel (%p1531) target = $region218
        $region217: #{tpu_custom_call.1} parent=181 // pred_region
          %v1534 = vld [vmem:[#allocation2] sm:$0xff]
          %v1535 = vld [vmem:[#allocation2 + $0x8] sm:$0xff]
          %v1536 = vld [vmem:[#allocation3] sm:$0xff]
          %v1537 = vld [vmem:[#allocation3 + $0x8] sm:$0xff]
          %v1538 = vsub.f32 %v1534, %v1536
          %v1539 = vsub.f32 %v1535, %v1537
          %1540 = vadd.xlane.f32.xlu0 %v1538
          %v1541 = vpop.xlane.xlu0 %1540
          %1542 = vadd.xlane.f32.xlu0 %v1539
          %v1543 = vpop.xlane.xlu0 %1542
          %v1544 = vadd.f32 %v1541, %v1543
          %v1545 = vrot.slane %v1544, 4
          %v1546 = vadd.f32 %v1544, %v1545
          %v1547 = vrot.slane %v1546, 2
          %v1548 = vadd.f32 %v1546, %v1547
          %v1549 = vrot.slane %v1548, 1
          %v1550 = vadd.f32 %v1548, %v1549
          %1551 = vst [vmem:[%s738] sm:$0xff] %v1550
        $region218: #{tpu_custom_call.1} parent=181 // pred_fallthru
          _
        %s1552 = sand.u32 %s394, 1
        %s1553 = scalar_lea.sflag [#allocation10], %s1552
        %s1554 = sand.u32 %s394, 1
        %s1555 = smul.addr %s1554, 8
        %s1556 = scalar_lea.vmem [#allocation16], %s1555
        // Predicated region
        $region219: #{tpu_custom_call.1} parent=181 // pred_check
          %p1557 = pneg %p404
        $region220: #{tpu_custom_call.1} parent=181 // pred_check_branch
          %1559 = sbr.rel (%p1557) target = $region222
        $region221: #{tpu_custom_call.1} parent=181 // pred_region
          %s1561 = ssub.s32 128, 128
          %1562 = vsyncadd %s1553, %s1561
          %s1563 = smul.addr %s36, 128
          %s1564 = scalar_lea.hbm %s15, %s1563
          %s1566 = sshll.u32 %s1556, 4
          %s1567 = int_to_ptr.vmem [resolvable:$true] %s1566
          %1569 = dma.vmem_to_hbm [thread:$0]  %s1567, 128, %s1564, %s1553
        $region222: #{tpu_custom_call.1} parent=181 // pred_fallthru
          _
      $region182: #{tpu_custom_call.1} parent=5 // pred_fallthru
        _
      %p1570 = scmp.le.s32.totalorder 2, %s27
      // Predicated region
      $region223: #{tpu_custom_call.1} parent=5 // pred_check
        %p1571 = pneg %p1570
      $region224: #{tpu_custom_call.1} parent=5 // pred_check_branch
        %1573 = sbr.rel (%p1571) target = $region226
      $region225: #{tpu_custom_call.1} parent=5 // pred_region
        %s1574 = ssub.s32 %s27, 2
        // Predicated region
        $region227: #{tpu_custom_call.1} parent=225 // pred_check
          %p1575 = pneg %p410
        $region228: #{tpu_custom_call.1} parent=225 // pred_check_branch
          %1577 = sbr.rel (%p1575) target = $region230
        $region229: #{tpu_custom_call.1} parent=225 // pred_region
          %s1578 = sand.u32 %s395, 1
          %s1579 = scalar_lea.sflag [#allocation10], %s1578
          %s1580 = sand.u32 %s395, 1
          %s1581 = smul.addr %s1580, 8
          %s1582 = scalar_lea.vmem [#allocation16], %s1581
          %1583 = dma.done %s1579, 128
        $region230: #{tpu_custom_call.1} parent=225 // pred_fallthru
          _
      $region226: #{tpu_custom_call.1} parent=5 // pred_fallthru
        _
    $region6: #{tpu_custom_call.1} parent=1 // loop_footer
      %s31 = sadd.s32 1, %s27
    $region7: #{tpu_custom_call.1} parent=1 // loop_footer_branch
      %26 = sbr.rel target = $region3
    $region8: #{tpu_custom_call.1} parent=1 // loop_exit
      _
    %1584 = vsyncpa [#allocation9], 1
    %s1585 = scalar_lea.sflag [#allocation9], 1
    %1586 = vsyncpa %s1585, 1
    %1587 = vsyncpa [#allocation12], 1
    %1588 = vsyncpa [#allocation15], 1
    %1589 = vsyncpa [#allocation10], 1
    %s1590 = scalar_lea.sflag [#allocation10], 1
    %1591 = vsyncpa %s1590, 1

</llo_original>
